<compile_context>
chip_gen: v7x
topology: tpu7x:2x2x1
jax: 0.10.0
libtpu: 0.0.40
codegen_flags: <defaults>
</compile_context>

<pallas_src>
import functools

import jax
import jax.numpy as jnp
from jax import lax
from jax.experimental import pallas as pl
from jax.experimental.pallas import tpu as pltpu


def _mnr_loss_kernel(anchor_ref, positive_ref, negative_ref, label_ref,
                     loss_ref, *, temperature, block_m, batch, padded_batch):
    i = pl.program_id(0)
    row0 = pl.multiple_of(i * block_m, block_m)

    # Row tile of the lhs, sliced out of the resident anchor block. The
    # 1/temperature scale is folded into the [TM, D] lhs tile (D << 3B), so
    # the three [TM, B] score blocks need no post-matmul VPU multiply.
    a_tile = anchor_ref[pl.ds(row0, block_m), :]
    a_tile = a_tile * jnp.asarray(1.0 / temperature, dtype=a_tile.dtype)

    # Three column blocks of scores; contraction on the last dims directly
    # (no transpose / concat materialized in the kernel body).
    dn = (((1,), (1,)), ((), ()))
    s_a = lax.dot_general(a_tile, anchor_ref[...], dn,
                          preferred_element_type=jnp.float32)    # [TM, Bp]
    s_p = lax.dot_general(a_tile, positive_ref[...], dn,
                          preferred_element_type=jnp.float32)    # [TM, Bp]
    s_n = lax.dot_general(a_tile, negative_ref[...], dn,
                          preferred_element_type=jnp.float32)    # [TM, Bp]

    cols = lax.broadcasted_iota(jnp.int32, (block_m, padded_batch), 1)
    row_ids = row0 + lax.broadcasted_iota(jnp.int32, (block_m, 1), 0)  # [TM,1]
    neg_inf = jnp.float32(-jnp.inf)
    zero = jnp.float32(0.0)

    # The diagonal of the virtual [3B, 3B] matrix only intersects the anchor
    # column block for the rows (< B) the cross-entropy consumes.
    s_a = jnp.where(cols == row_ids, neg_inf, s_a)

    padded = padded_batch > batch
    if padded:
        # Padding rows appended in the wrapper must not act as columns of the
        # softmax (their embeddings are zero, not -inf, by construction).
        col_valid = cols < batch
        s_a = jnp.where(col_valid, s_a, neg_inf)
        s_p = jnp.where(col_valid, s_p, neg_inf)
        s_n = jnp.where(col_valid, s_n, neg_inf)

    labels = label_ref[...].astype(jnp.int32)                    # [TM, 1]

    # Numerically-stable logsumexp over the three blocks (no lane concat).
    m = jnp.max(s_a, axis=-1, keepdims=True)
    m = jnp.maximum(m, jnp.max(s_p, axis=-1, keepdims=True))
    m = jnp.maximum(m, jnp.max(s_n, axis=-1, keepdims=True))     # [TM, 1]

    # Fused exp + target pass: each score block feeds both the softmax
    # denominator and the gathered target logit in one sweep.
    sum_exp = jnp.zeros((block_m, 1), jnp.float32)
    target = jnp.zeros((block_m, 1), jnp.float32)
    for s, off in ((s_a, 0), (s_p, batch), (s_n, 2 * batch)):
        sum_exp = sum_exp + jnp.sum(jnp.exp(s - m), axis=-1, keepdims=True)
        match = cols == (labels - off)
        if padded:
            # Never match a padded (-inf) column of the "wrong" block.
            match = jnp.logical_and(match, col_valid)
        target = target + jnp.sum(jnp.where(match, s, zero),
                                  axis=-1, keepdims=True)

    per_row = (m + jnp.log(sum_exp)) - target                    # [TM, 1]
    if padded:
        per_row = jnp.where(row_ids < batch, per_row, zero)
    loss_ref[...] = per_row


def _round_up(x, m):
    return -(-x // m) * m


def _choose_tiling(batch):
    """Return (padded_batch, block_m, num_tiles).

    block_m is a multiple of 8 and <= 256 (small [TM, B] f32 temporaries,
    MXU-friendly); >= 2 grid steps are guaranteed so a 'parallel' grid axis
    can be sharded across v7x's two TensorCores.
    """
    b8 = _round_up(max(int(batch), 1), 8)
    num_tiles = max(2, _round_up(b8, 256) // 256)
    block_m = _round_up(-(-b8 // num_tiles), 8)
    padded_batch = block_m * num_tiles
    return padded_batch, block_m, num_tiles


def _vmem_cap_bytes():
    """Generation-aware per-core VMEM cap with headroom."""
    try:
        cap = int(pltpu.get_tpu_info().vmem_capacity_bytes)
    except Exception:  # pragma: no cover - emulator / older jax
        cap = 64 * 1024 * 1024  # v7x per-TC capacity: safe lower bound
    return max(16 * 1024 * 1024, cap - 6 * 1024 * 1024)


def multiple_negatives_ranking_loss(anchor, positive, negative, label,
                                    temperature=0.05):
    """anchor/positive/negative: [B, D]; label: [B] int indices into the
    (virtual) concatenated [3B] axis. Returns the scalar mean CE loss.

    Note: if label[r] == r (pointing at the masked anchor diagonal) the loss
    is +inf — identical to the reference module's behavior.
    """
    B, D = anchor.shape
    b_pad, block_m, num_tiles = _choose_tiling(B)

    label2d = label.astype(jnp.int32).reshape(B, 1)
    if b_pad > B:
        pad = b_pad - B
        anchor = jnp.pad(anchor, ((0, pad), (0, 0)))
        positive = jnp.pad(positive, ((0, pad), (0, 0)))
        negative = jnp.pad(negative, ((0, pad), (0, 0)))
        label2d = jnp.pad(label2d, ((0, pad), (0, 0)))

    kernel = functools.partial(_mnr_loss_kernel,
                               temperature=float(temperature),
                               block_m=block_m, batch=B, padded_batch=b_pad)

    itemsize = jnp.dtype(anchor.dtype).itemsize
    # VMEM budget: 3 single-buffered resident [Bp, D] blocks + f32 score /
    # exp / select temporaries + the cols iota + small label / per-row output
    # pipeline buffers + headroom.
    vmem_bytes = (3 * b_pad * D * itemsize
                  + 8 * block_m * b_pad * 4
                  + 4 * block_m * 4
                  + (2 << 20))
    vmem_limit = int(min(_vmem_cap_bytes(), max(32 * 1024 * 1024, vmem_bytes)))

    cost = pl.CostEstimate(
        flops=2 * b_pad * (3 * b_pad) * D,
        transcendentals=b_pad * (3 * b_pad),
        bytes_accessed=3 * b_pad * D * itemsize + 2 * b_pad * 4,
    )

    def run(resident_pipeline_mode):
        kw = ({} if resident_pipeline_mode is None
              else {"pipeline_mode": resident_pipeline_mode})

        def resident():
            return pl.BlockSpec((b_pad, D), lambda i: (0, 0), **kw)

        return pl.pallas_call(
            kernel,
            out_shape=jax.ShapeDtypeStruct((b_pad, 1), jnp.float32),
            grid_spec=pltpu.PrefetchScalarGridSpec(
                num_scalar_prefetch=0,
                grid=(num_tiles,),
                in_specs=[
                    resident(),                                    # anchor
                    resident(),                                    # positive
                    resident(),                                    # negative
                    pl.BlockSpec((block_m, 1), lambda i: (i, 0)),  # labels
                ],
                out_specs=pl.BlockSpec((block_m, 1), lambda i: (i, 0)),
            ),
            compiler_params=pltpu.CompilerParams(
                dimension_semantics=("parallel",),
                vmem_limit_bytes=vmem_limit),
            cost_estimate=cost,
        )(anchor, positive, negative, label2d)

    try:
        # Constant-index resident blocks: a single buffer is enough (their
        # window never changes), halving resident-input VMEM.
        per_row = run(pl.Buffered(1))
    except Exception:  # pragma: no cover - jax without pipeline_mode support
        per_row = run(None)

    return jnp.sum(per_row) / jnp.float32(B)


def _reference_loss(anchor, positive, negative, label, temperature=0.05):
    """Pure-JAX reference mirroring the PyTorch module."""
    concat = jnp.concatenate([anchor, positive, negative], axis=0)
    n = concat.shape[0]
    b = anchor.shape[0]
    mat = concat.astype(jnp.float32) @ concat.astype(jnp.float32).T
    mat = jnp.where(jnp.eye(n, dtype=bool), -jnp.inf, mat)
    mat = mat / temperature
    logits = mat[:b]
    lse = jax.scipy.special.logsumexp(logits, axis=-1)
    tgt = jnp.take_along_axis(logits, label[:, None].astype(jnp.int32),
                              axis=-1)[:, 0]
    return jnp.mean(lse - tgt)


if __name__ == "__main__":
    B, D = 8, 32
    temperature = 0.05

    key = jax.random.PRNGKey(0)
    k1, k2, k3 = jax.random.split(key, 3)
    anchor = jax.random.normal(k1, (B, D), dtype=jnp.float32)
    positive = jax.random.normal(k2, (B, D), dtype=jnp.float32)
    negative = jax.random.normal(k3, (B, D), dtype=jnp.float32)
    # standard MNR labels: positive of a_i lives at index B + i in the concat
    label = jnp.arange(B, dtype=jnp.int32) + B

    loss = multiple_negatives_ranking_loss(anchor, positive, negative, label,
                                           temperature=temperature)
    loss = jax.block_until_ready(loss)

    ref = _reference_loss(anchor, positive, negative, label, temperature)
    assert jnp.isfinite(loss), "kernel produced non-finite loss"
    assert jnp.allclose(loss, ref, rtol=1e-4, atol=1e-5), (loss, ref)

    print("KERNEL_OK")
</pallas_src>

<mosaic_0001>
module attributes {stable_mosaic.version = 11 : i64} {
  func.func @_mnr_loss_kernel(%arg0: i32, %arg1: memref<16x32xf32, #tpu.memory_space<vmem>>, %arg2: memref<16x32xf32, #tpu.memory_space<vmem>>, %arg3: memref<16x32xf32, #tpu.memory_space<vmem>>, %arg4: memref<8x1xi32, #tpu.memory_space<vmem>>, %arg5: memref<8x1xf32, #tpu.memory_space<vmem>>) attributes {dimension_semantics = [#tpu.dimension_semantics<parallel>], iteration_bounds = array<i64: 2>, scalar_prefetch = 0 : i64, scratch_operands = 0 : i64, tpu.core_type = #tpu.core_type<tc>, window_params = [{pipeline_mode = #tpu.pipeline_mode<synchronous>, transform_indices = @transform_0, window_bounds = array<i64: 16, 32>}, {pipeline_mode = #tpu.pipeline_mode<synchronous>, transform_indices = @transform_1, window_bounds = array<i64: 16, 32>}, {pipeline_mode = #tpu.pipeline_mode<synchronous>, transform_indices = @transform_2, window_bounds = array<i64: 16, 32>}, {transform_indices = @transform_3, window_bounds = array<i64: 8, 1>}, {transform_indices = @transform_4, window_bounds = array<i64: 8, 1>}]} {
    %c8_i32 = arith.constant 8 : i32
    %0 = arith.muli %arg0, %c8_i32 : i32
    %1 = tpu.assume_multiple %0, 8 : i32
    %2 = arith.index_cast %1 : i32 to index
    %c0 = arith.constant 0 : index
    %3 = vector.load %arg1[%2, %c0] : memref<16x32xf32, #tpu.memory_space<vmem>>, vector<8x32xf32>
    %cst = arith.constant 2.000000e+01 : f32
    %4 = vector.broadcast %cst : f32 to vector<8x32xf32>
    %5 = arith.mulf %3, %4 : vector<8x32xf32>
    %c0_0 = arith.constant 0 : index
    %c0_1 = arith.constant 0 : index
    %6 = vector.load %arg1[%c0_0, %c0_1] : memref<16x32xf32, #tpu.memory_space<vmem>>, vector<16x32xf32>
    %cst_2 = arith.constant dense<0.000000e+00> : vector<8x16xf32>
    %7 = tpu.matmul %5, %6, %cst_2 {dimension_numbers = #tpu.dot_dimension_numbers<[1], [1], [0], [0], [0, 0, 1, 0], [], []>} : vector<8x32xf32>, vector<16x32xf32>, vector<8x16xf32> -> vector<8x16xf32>
    %c0_3 = arith.constant 0 : index
    %c0_4 = arith.constant 0 : index
    %8 = vector.load %arg2[%c0_3, %c0_4] : memref<16x32xf32, #tpu.memory_space<vmem>>, vector<16x32xf32>
    %cst_5 = arith.constant dense<0.000000e+00> : vector<8x16xf32>
    %9 = tpu.matmul %5, %8, %cst_5 {dimension_numbers = #tpu.dot_dimension_numbers<[1], [1], [0], [0], [0, 0, 1, 0], [], []>} : vector<8x32xf32>, vector<16x32xf32>, vector<8x16xf32> -> vector<8x16xf32>
    %c0_6 = arith.constant 0 : index
    %c0_7 = arith.constant 0 : index
    %10 = vector.load %arg3[%c0_6, %c0_7] : memref<16x32xf32, #tpu.memory_space<vmem>>, vector<16x32xf32>
    %cst_8 = arith.constant dense<0.000000e+00> : vector<8x16xf32>
    %11 = tpu.matmul %5, %10, %cst_8 {dimension_numbers = #tpu.dot_dimension_numbers<[1], [1], [0], [0], [0, 0, 1, 0], [], []>} : vector<8x32xf32>, vector<16x32xf32>, vector<8x16xf32> -> vector<8x16xf32>
    %12 = tpu.iota {dimensions = array<i32: 1>} : vector<8x16xi32>
    %13 = tpu.iota {dimensions = array<i32: 0>} : vector<8x1xi32>
    %14 = vector.broadcast %1 : i32 to vector<8x1xi32>
    %15 = arith.addi %14, %13 : vector<8x1xi32>
    %16 = vector.broadcast %15 : vector<8x1xi32> to vector<8x16xi32>
    %17 = arith.cmpi eq, %12, %16 : vector<8x16xi32>
    %cst_9 = arith.constant 0xFF800000 : f32
    %18 = vector.broadcast %cst_9 : f32 to vector<8x16xf32>
    %19 = arith.select %17, %18, %7 : vector<8x16xi1>, vector<8x16xf32>
    %c8_i32_10 = arith.constant 8 : i32
    %20 = vector.broadcast %c8_i32_10 : i32 to vector<8x16xi32>
    %21 = arith.cmpi slt, %12, %20 : vector<8x16xi32>
    %cst_11 = arith.constant 0xFF800000 : f32
    %22 = vector.broadcast %cst_11 : f32 to vector<8x16xf32>
    %23 = arith.select %21, %19, %22 : vector<8x16xi1>, vector<8x16xf32>
    %cst_12 = arith.constant 0xFF800000 : f32
    %24 = vector.broadcast %cst_12 : f32 to vector<8x16xf32>
    %25 = arith.select %21, %9, %24 : vector<8x16xi1>, vector<8x16xf32>
    %cst_13 = arith.constant 0xFF800000 : f32
    %26 = vector.broadcast %cst_13 : f32 to vector<8x16xf32>
    %27 = arith.select %21, %11, %26 : vector<8x16xi1>, vector<8x16xf32>
    %c0_14 = arith.constant 0 : index
    %c0_15 = arith.constant 0 : index
    %28 = vector.load %arg4[%c0_14, %c0_15] : memref<8x1xi32, #tpu.memory_space<vmem>>, vector<8x1xi32>
    %cst_16 = arith.constant dense<0xFF800000> : vector<8xf32>
    %29 = vector.multi_reduction <maximumf>, %23, %cst_16 [1] : vector<8x16xf32> to vector<8xf32>
    %30 = vector.shape_cast %29 : vector<8xf32> to vector<8x1xf32>
    %cst_17 = arith.constant dense<0xFF800000> : vector<8xf32>
    %31 = vector.multi_reduction <maximumf>, %25, %cst_17 [1] : vector<8x16xf32> to vector<8xf32>
    %32 = vector.shape_cast %31 : vector<8xf32> to vector<8x1xf32>
    %33 = arith.maximumf %30, %32 : vector<8x1xf32>
    %cst_18 = arith.constant dense<0xFF800000> : vector<8xf32>
    %34 = vector.multi_reduction <maximumf>, %27, %cst_18 [1] : vector<8x16xf32> to vector<8xf32>
    %35 = vector.shape_cast %34 : vector<8xf32> to vector<8x1xf32>
    %36 = arith.maximumf %33, %35 : vector<8x1xf32>
    %cst_19 = arith.constant 0.000000e+00 : f32
    %37 = vector.broadcast %cst_19 : f32 to vector<8x1xf32>
    %cst_20 = arith.constant 0.000000e+00 : f32
    %38 = vector.broadcast %cst_20 : f32 to vector<8x1xf32>
    %39 = vector.broadcast %36 : vector<8x1xf32> to vector<8x16xf32>
    %40 = arith.subf %23, %39 : vector<8x16xf32>
    %41 = math.exp %40 : vector<8x16xf32>
    %cst_21 = arith.constant dense<0.000000e+00> : vector<8xf32>
    %42 = vector.multi_reduction <add>, %41, %cst_21 [1] : vector<8x16xf32> to vector<8xf32>
    %43 = vector.shape_cast %42 : vector<8xf32> to vector<8x1xf32>
    %44 = arith.addf %37, %43 : vector<8x1xf32>
    %c0_i32 = arith.constant 0 : i32
    %45 = vector.broadcast %c0_i32 : i32 to vector<8x1xi32>
    %46 = arith.subi %28, %45 : vector<8x1xi32>
    %47 = vector.broadcast %46 : vector<8x1xi32> to vector<8x16xi32>
    %48 = arith.cmpi eq, %12, %47 : vector<8x16xi32>
    %49 = arith.andi %48, %21 : vector<8x16xi1>
    %cst_22 = arith.constant 0.000000e+00 : f32
    %50 = vector.broadcast %cst_22 : f32 to vector<8x16xf32>
    %51 = arith.select %49, %23, %50 : vector<8x16xi1>, vector<8x16xf32>
    %cst_23 = arith.constant dense<0.000000e+00> : vector<8xf32>
    %52 = vector.multi_reduction <add>, %51, %cst_23 [1] : vector<8x16xf32> to vector<8xf32>
    %53 = vector.shape_cast %52 : vector<8xf32> to vector<8x1xf32>
    %54 = arith.addf %38, %53 : vector<8x1xf32>
    %55 = vector.broadcast %36 : vector<8x1xf32> to vector<8x16xf32>
    %56 = arith.subf %25, %55 : vector<8x16xf32>
    %57 = math.exp %56 : vector<8x16xf32>
    %cst_24 = arith.constant dense<0.000000e+00> : vector<8xf32>
    %58 = vector.multi_reduction <add>, %57, %cst_24 [1] : vector<8x16xf32> to vector<8xf32>
    %59 = vector.shape_cast %58 : vector<8xf32> to vector<8x1xf32>
    %60 = arith.addf %44, %59 : vector<8x1xf32>
    %c8_i32_25 = arith.constant 8 : i32
    %61 = vector.broadcast %c8_i32_25 : i32 to vector<8x1xi32>
    %62 = arith.subi %28, %61 : vector<8x1xi32>
    %63 = vector.broadcast %62 : vector<8x1xi32> to vector<8x16xi32>
    %64 = arith.cmpi eq, %12, %63 : vector<8x16xi32>
    %65 = arith.andi %64, %21 : vector<8x16xi1>
    %cst_26 = arith.constant 0.000000e+00 : f32
    %66 = vector.broadcast %cst_26 : f32 to vector<8x16xf32>
    %67 = arith.select %65, %25, %66 : vector<8x16xi1>, vector<8x16xf32>
    %cst_27 = arith.constant dense<0.000000e+00> : vector<8xf32>
    %68 = vector.multi_reduction <add>, %67, %cst_27 [1] : vector<8x16xf32> to vector<8xf32>
    %69 = vector.shape_cast %68 : vector<8xf32> to vector<8x1xf32>
    %70 = arith.addf %54, %69 : vector<8x1xf32>
    %71 = vector.broadcast %36 : vector<8x1xf32> to vector<8x16xf32>
    %72 = arith.subf %27, %71 : vector<8x16xf32>
    %73 = math.exp %72 : vector<8x16xf32>
    %cst_28 = arith.constant dense<0.000000e+00> : vector<8xf32>
    %74 = vector.multi_reduction <add>, %73, %cst_28 [1] : vector<8x16xf32> to vector<8xf32>
    %75 = vector.shape_cast %74 : vector<8xf32> to vector<8x1xf32>
    %76 = arith.addf %60, %75 : vector<8x1xf32>
    %c16_i32 = arith.constant 16 : i32
    %77 = vector.broadcast %c16_i32 : i32 to vector<8x1xi32>
    %78 = arith.subi %28, %77 : vector<8x1xi32>
    %79 = vector.broadcast %78 : vector<8x1xi32> to vector<8x16xi32>
    %80 = arith.cmpi eq, %12, %79 : vector<8x16xi32>
    %81 = arith.andi %80, %21 : vector<8x16xi1>
    %cst_29 = arith.constant 0.000000e+00 : f32
    %82 = vector.broadcast %cst_29 : f32 to vector<8x16xf32>
    %83 = arith.select %81, %27, %82 : vector<8x16xi1>, vector<8x16xf32>
    %cst_30 = arith.constant dense<0.000000e+00> : vector<8xf32>
    %84 = vector.multi_reduction <add>, %83, %cst_30 [1] : vector<8x16xf32> to vector<8xf32>
    %85 = vector.shape_cast %84 : vector<8xf32> to vector<8x1xf32>
    %86 = arith.addf %70, %85 : vector<8x1xf32>
    %87 = math.log %76 : vector<8x1xf32>
    %88 = arith.addf %36, %87 : vector<8x1xf32>
    %89 = arith.subf %88, %86 : vector<8x1xf32>
    %c8_i32_31 = arith.constant 8 : i32
    %90 = vector.broadcast %c8_i32_31 : i32 to vector<8x1xi32>
    %91 = arith.cmpi slt, %15, %90 : vector<8x1xi32>
    %cst_32 = arith.constant 0.000000e+00 : f32
    %92 = vector.broadcast %cst_32 : f32 to vector<8x1xf32>
    %93 = arith.select %91, %89, %92 : vector<8x1xi1>, vector<8x1xf32>
    %c0_33 = arith.constant 0 : index
    %c0_34 = arith.constant 0 : index
    %94 = vector.load %arg5[%c0_33, %c0_34] : memref<8x1xf32, #tpu.memory_space<vmem>>, vector<8x1xf32>
    tpu.vector_store %arg5[%c0_33, %c0_34], %93 {strides = array<i32>} : memref<8x1xf32, #tpu.memory_space<vmem>>, vector<8x1xf32>,
    return
  }
  func.func @transform_0(%arg0: i32) -> (i32, i32) {
    %c0_i32 = arith.constant 0 : i32
    %c0_i32_0 = arith.constant 0 : i32
    %c0_i32_1 = arith.constant 0 : i32
    return %c0_i32, %c0_i32_0 : i32, i32
  }
  func.func @transform_1(%arg0: i32) -> (i32, i32) {
    %c0_i32 = arith.constant 0 : i32
    %c0_i32_0 = arith.constant 0 : i32
    %c0_i32_1 = arith.constant 0 : i32
    return %c0_i32, %c0_i32_0 : i32, i32
  }
  func.func @transform_2(%arg0: i32) -> (i32, i32) {
    %c0_i32 = arith.constant 0 : i32
    %c0_i32_0 = arith.constant 0 : i32
    %c0_i32_1 = arith.constant 0 : i32
    return %c0_i32, %c0_i32_0 : i32, i32
  }
  func.func @transform_3(%arg0: i32) -> (i32, i32) {
    %c0_i32 = arith.constant 0 : i32
    %c0_i32_0 = arith.constant 0 : i32
    return %arg0, %c0_i32 : i32, i32
  }
  func.func @transform_4(%arg0: i32) -> (i32, i32) {
    %c0_i32 = arith.constant 0 : i32
    %c0_i32_0 = arith.constant 0 : i32
    return %arg0, %c0_i32 : i32, i32
  }
}

module attributes {stable_mosaic.version = 11 : i64} {
  func.func @_mnr_loss_kernel(%arg0: i32, %arg1: memref<16x32xf32, #tpu.memory_space<vmem>>, %arg2: memref<16x32xf32, #tpu.memory_space<vmem>>, %arg3: memref<16x32xf32, #tpu.memory_space<vmem>>, %arg4: memref<8x1xi32, #tpu.memory_space<vmem>>, %arg5: memref<8x1xf32, #tpu.memory_space<vmem>>) attributes {dimension_semantics = [#tpu.dimension_semantics<parallel>], iteration_bounds = array<i64: 2>, scalar_prefetch = 0 : i64, scratch_operands = 0 : i64, tpu.core_type = #tpu.core_type<tc>, window_params = [{pipeline_mode = #tpu.pipeline_mode<synchronous>, transform_indices = @transform_0, window_bounds = array<i64: 16, 32>}, {pipeline_mode = #tpu.pipeline_mode<synchronous>, transform_indices = @transform_1, window_bounds = array<i64: 16, 32>}, {pipeline_mode = #tpu.pipeline_mode<synchronous>, transform_indices = @transform_2, window_bounds = array<i64: 16, 32>}, {transform_indices = @transform_3, window_bounds = array<i64: 8, 1>}, {transform_indices = @transform_4, window_bounds = array<i64: 8, 1>}]} {
    %c8_i32 = arith.constant 8 : i32
    %0 = arith.muli %arg0, %c8_i32 : i32
    %1 = tpu.assume_multiple %0, 8 : i32
    %2 = arith.index_cast %1 : i32 to index
    %c0 = arith.constant 0 : index
    %3 = vector.load %arg1[%2, %c0] : memref<16x32xf32, #tpu.memory_space<vmem>>, vector<8x32xf32>
    %cst = arith.constant 2.000000e+01 : f32
    %4 = vector.broadcast %cst : f32 to vector<8x32xf32>
    %5 = arith.mulf %3, %4 : vector<8x32xf32>
    %c0_0 = arith.constant 0 : index
    %c0_1 = arith.constant 0 : index
    %6 = vector.load %arg1[%c0_0, %c0_1] : memref<16x32xf32, #tpu.memory_space<vmem>>, vector<16x32xf32>
    %cst_2 = arith.constant dense<0.000000e+00> : vector<8x16xf32>
    %7 = tpu.matmul %5, %6, %cst_2 {dimension_numbers = #tpu.dot_dimension_numbers<[1], [1], [0], [0], [0, 0, 1, 0], [], []>} : vector<8x32xf32>, vector<16x32xf32>, vector<8x16xf32> -> vector<8x16xf32>
    %c0_3 = arith.constant 0 : index
    %c0_4 = arith.constant 0 : index
    %8 = vector.load %arg2[%c0_3, %c0_4] : memref<16x32xf32, #tpu.memory_space<vmem>>, vector<16x32xf32>
    %cst_5 = arith.constant dense<0.000000e+00> : vector<8x16xf32>
    %9 = tpu.matmul %5, %8, %cst_5 {dimension_numbers = #tpu.dot_dimension_numbers<[1], [1], [0], [0], [0, 0, 1, 0], [], []>} : vector<8x32xf32>, vector<16x32xf32>, vector<8x16xf32> -> vector<8x16xf32>
    %c0_6 = arith.constant 0 : index
    %c0_7 = arith.constant 0 : index
    %10 = vector.load %arg3[%c0_6, %c0_7] : memref<16x32xf32, #tpu.memory_space<vmem>>, vector<16x32xf32>
    %cst_8 = arith.constant dense<0.000000e+00> : vector<8x16xf32>
    %11 = tpu.matmul %5, %10, %cst_8 {dimension_numbers = #tpu.dot_dimension_numbers<[1], [1], [0], [0], [0, 0, 1, 0], [], []>} : vector<8x32xf32>, vector<16x32xf32>, vector<8x16xf32> -> vector<8x16xf32>
    %12 = tpu.iota {dimensions = array<i32: 1>} : vector<8x16xi32>
    %13 = tpu.iota {dimensions = array<i32: 0>} : vector<8x1xi32>
    %14 = vector.broadcast %1 : i32 to vector<8x1xi32>
    %15 = arith.addi %14, %13 : vector<8x1xi32>
    %16 = vector.broadcast %15 : vector<8x1xi32> to vector<8x16xi32>
    %17 = arith.cmpi eq, %12, %16 : vector<8x16xi32>
    %cst_9 = arith.constant 0xFF800000 : f32
    %18 = vector.broadcast %cst_9 : f32 to vector<8x16xf32>
    %19 = arith.select %17, %18, %7 : vector<8x16xi1>, vector<8x16xf32>
    %c8_i32_10 = arith.constant 8 : i32
    %20 = vector.broadcast %c8_i32_10 : i32 to vector<8x16xi32>
    %21 = arith.cmpi slt, %12, %20 : vector<8x16xi32>
    %cst_11 = arith.constant 0xFF800000 : f32
    %22 = vector.broadcast %cst_11 : f32 to vector<8x16xf32>
    %23 = arith.select %21, %19, %22 : vector<8x16xi1>, vector<8x16xf32>
    %cst_12 = arith.constant 0xFF800000 : f32
    %24 = vector.broadcast %cst_12 : f32 to vector<8x16xf32>
    %25 = arith.select %21, %9, %24 : vector<8x16xi1>, vector<8x16xf32>
    %cst_13 = arith.constant 0xFF800000 : f32
    %26 = vector.broadcast %cst_13 : f32 to vector<8x16xf32>
    %27 = arith.select %21, %11, %26 : vector<8x16xi1>, vector<8x16xf32>
    %c0_14 = arith.constant 0 : index
    %c0_15 = arith.constant 0 : index
    %28 = vector.load %arg4[%c0_14, %c0_15] : memref<8x1xi32, #tpu.memory_space<vmem>>, vector<8x1xi32>
    %cst_16 = arith.constant dense<0xFF800000> : vector<8xf32>
    %29 = vector.multi_reduction <maximumf>, %23, %cst_16 [1] : vector<8x16xf32> to vector<8xf32>
    %30 = vector.shape_cast %29 : vector<8xf32> to vector<8x1xf32>
    %cst_17 = arith.constant dense<0xFF800000> : vector<8xf32>
    %31 = vector.multi_reduction <maximumf>, %25, %cst_17 [1] : vector<8x16xf32> to vector<8xf32>
    %32 = vector.shape_cast %31 : vector<8xf32> to vector<8x1xf32>
    %33 = arith.maximumf %30, %32 : vector<8x1xf32>
    %cst_18 = arith.constant dense<0xFF800000> : vector<8xf32>
    %34 = vector.multi_reduction <maximumf>, %27, %cst_18 [1] : vector<8x16xf32> to vector<8xf32>
    %35 = vector.shape_cast %34 : vector<8xf32> to vector<8x1xf32>
    %36 = arith.maximumf %33, %35 : vector<8x1xf32>
    %cst_19 = arith.constant 0.000000e+00 : f32
    %37 = vector.broadcast %cst_19 : f32 to vector<8x1xf32>
    %cst_20 = arith.constant 0.000000e+00 : f32
    %38 = vector.broadcast %cst_20 : f32 to vector<8x1xf32>
    %39 = vector.broadcast %36 : vector<8x1xf32> to vector<8x16xf32>
    %40 = arith.subf %23, %39 : vector<8x16xf32>
    %41 = math.exp %40 : vector<8x16xf32>
    %cst_21 = arith.constant dense<0.000000e+00> : vector<8xf32>
    %42 = vector.multi_reduction <add>, %41, %cst_21 [1] : vector<8x16xf32> to vector<8xf32>
    %43 = vector.shape_cast %42 : vector<8xf32> to vector<8x1xf32>
    %44 = arith.addf %37, %43 : vector<8x1xf32>
    %c0_i32 = arith.constant 0 : i32
    %45 = vector.broadcast %c0_i32 : i32 to vector<8x1xi32>
    %46 = arith.subi %28, %45 : vector<8x1xi32>
    %47 = vector.broadcast %46 : vector<8x1xi32> to vector<8x16xi32>
    %48 = arith.cmpi eq, %12, %47 : vector<8x16xi32>
    %49 = arith.andi %48, %21 : vector<8x16xi1>
    %cst_22 = arith.constant 0.000000e+00 : f32
    %50 = vector.broadcast %cst_22 : f32 to vector<8x16xf32>
    %51 = arith.select %49, %23, %50 : vector<8x16xi1>, vector<8x16xf32>
    %cst_23 = arith.constant dense<0.000000e+00> : vector<8xf32>
    %52 = vector.multi_reduction <add>, %51, %cst_23 [1] : vector<8x16xf32> to vector<8xf32>
    %53 = vector.shape_cast %52 : vector<8xf32> to vector<8x1xf32>
    %54 = arith.addf %38, %53 : vector<8x1xf32>
    %55 = vector.broadcast %36 : vector<8x1xf32> to vector<8x16xf32>
    %56 = arith.subf %25, %55 : vector<8x16xf32>
    %57 = math.exp %56 : vector<8x16xf32>
    %cst_24 = arith.constant dense<0.000000e+00> : vector<8xf32>
    %58 = vector.multi_reduction <add>, %57, %cst_24 [1] : vector<8x16xf32> to vector<8xf32>
    %59 = vector.shape_cast %58 : vector<8xf32> to vector<8x1xf32>
    %60 = arith.addf %44, %59 : vector<8x1xf32>
    %c8_i32_25 = arith.constant 8 : i32
    %61 = vector.broadcast %c8_i32_25 : i32 to vector<8x1xi32>
    %62 = arith.subi %28, %61 : vector<8x1xi32>
    %63 = vector.broadcast %62 : vector<8x1xi32> to vector<8x16xi32>
    %64 = arith.cmpi eq, %12, %63 : vector<8x16xi32>
    %65 = arith.andi %64, %21 : vector<8x16xi1>
    %cst_26 = arith.constant 0.000000e+00 : f32
    %66 = vector.broadcast %cst_26 : f32 to vector<8x16xf32>
    %67 = arith.select %65, %25, %66 : vector<8x16xi1>, vector<8x16xf32>
    %cst_27 = arith.constant dense<0.000000e+00> : vector<8xf32>
    %68 = vector.multi_reduction <add>, %67, %cst_27 [1] : vector<8x16xf32> to vector<8xf32>
    %69 = vector.shape_cast %68 : vector<8xf32> to vector<8x1xf32>
    %70 = arith.addf %54, %69 : vector<8x1xf32>
    %71 = vector.broadcast %36 : vector<8x1xf32> to vector<8x16xf32>
    %72 = arith.subf %27, %71 : vector<8x16xf32>
    %73 = math.exp %72 : vector<8x16xf32>
    %cst_28 = arith.constant dense<0.000000e+00> : vector<8xf32>
    %74 = vector.multi_reduction <add>, %73, %cst_28 [1] : vector<8x16xf32> to vector<8xf32>
    %75 = vector.shape_cast %74 : vector<8xf32> to vector<8x1xf32>
    %76 = arith.addf %60, %75 : vector<8x1xf32>
    %c16_i32 = arith.constant 16 : i32
    %77 = vector.broadcast %c16_i32 : i32 to vector<8x1xi32>
    %78 = arith.subi %28, %77 : vector<8x1xi32>
    %79 = vector.broadcast %78 : vector<8x1xi32> to vector<8x16xi32>
    %80 = arith.cmpi eq, %12, %79 : vector<8x16xi32>
    %81 = arith.andi %80, %21 : vector<8x16xi1>
    %cst_29 = arith.constant 0.000000e+00 : f32
    %82 = vector.broadcast %cst_29 : f32 to vector<8x16xf32>
    %83 = arith.select %81, %27, %82 : vector<8x16xi1>, vector<8x16xf32>
    %cst_30 = arith.constant dense<0.000000e+00> : vector<8xf32>
    %84 = vector.multi_reduction <add>, %83, %cst_30 [1] : vector<8x16xf32> to vector<8xf32>
    %85 = vector.shape_cast %84 : vector<8xf32> to vector<8x1xf32>
    %86 = arith.addf %70, %85 : vector<8x1xf32>
    %87 = math.log %76 : vector<8x1xf32>
    %88 = arith.addf %36, %87 : vector<8x1xf32>
    %89 = arith.subf %88, %86 : vector<8x1xf32>
    %c8_i32_31 = arith.constant 8 : i32
    %90 = vector.broadcast %c8_i32_31 : i32 to vector<8x1xi32>
    %91 = arith.cmpi slt, %15, %90 : vector<8x1xi32>
    %cst_32 = arith.constant 0.000000e+00 : f32
    %92 = vector.broadcast %cst_32 : f32 to vector<8x1xf32>
    %93 = arith.select %91, %89, %92 : vector<8x1xi1>, vector<8x1xf32>
    %c0_33 = arith.constant 0 : index
    %c0_34 = arith.constant 0 : index
    %94 = vector.load %arg5[%c0_33, %c0_34] : memref<8x1xf32, #tpu.memory_space<vmem>>, vector<8x1xf32>
    tpu.vector_store %arg5[%c0_33, %c0_34], %93 {strides = array<i32>} : memref<8x1xf32, #tpu.memory_space<vmem>>, vector<8x1xf32>,
    return
  }
  func.func @transform_0(%arg0: i32) -> (i32, i32) {
    %c0_i32 = arith.constant 0 : i32
    %c0_i32_0 = arith.constant 0 : i32
    %c0_i32_1 = arith.constant 0 : i32
    return %c0_i32, %c0_i32_0 : i32, i32
  }
  func.func @transform_1(%arg0: i32) -> (i32, i32) {
    %c0_i32 = arith.constant 0 : i32
    %c0_i32_0 = arith.constant 0 : i32
    %c0_i32_1 = arith.constant 0 : i32
    return %c0_i32, %c0_i32_0 : i32, i32
  }
  func.func @transform_2(%arg0: i32) -> (i32, i32) {
    %c0_i32 = arith.constant 0 : i32
    %c0_i32_0 = arith.constant 0 : i32
    %c0_i32_1 = arith.constant 0 : i32
    return %c0_i32, %c0_i32_0 : i32, i32
  }
  func.func @transform_3(%arg0: i32) -> (i32, i32) {
    %c0_i32 = arith.constant 0 : i32
    %c0_i32_0 = arith.constant 0 : i32
    return %arg0, %c0_i32 : i32, i32
  }
  func.func @transform_4(%arg0: i32) -> (i32, i32) {
    %c0_i32 = arith.constant 0 : i32
    %c0_i32_0 = arith.constant 0 : i32
    return %arg0, %c0_i32 : i32, i32
  }
}

</mosaic_0001>

<llo_original>
// kernel: tpu_custom_call.1
$region0: #{tpu_custom_call.1}
  #allocation0 [shape = 'u32[]', space=smem, size = 0x4, offset = 0x4, fixed_abs, tag = 'smem constant byte address 0x4 - core index']
  #allocation1 [shape = 'u32[144,128]{1,0:T(1,128)}', space=vmem, size = 0x12000, scoped, tag = 'internal scratch']
  %s0 = inlined_call_operand.vmem [shape: f32[16,32], index: 0, kind: input, shape index: {}]
  %s1 = inlined_call_operand.hbm [shape: f32[16,32], index: 1, kind: input, shape index: {}]
  %s2 = inlined_call_operand.hbm [shape: f32[16,32], index: 2, kind: input, shape index: {}]
  %s3 = inlined_call_operand.vmem [shape: s32[16,1], index: 3, kind: input, shape index: {}]
  %s4 = inlined_call_operand.vmem [shape: f32[16,1], index: 4, kind: output, shape index: {}]
  %s5 = sld [smem:[#allocation0]]
  $region57: #{tpu_custom_call.1} parent=0
    _
  %s7 = ssub.s32 1, %s5
  %s8 = scalar_select 0, %s7, %s5
  $region1: #{tpu_custom_call.1} parent=0
    #allocation2 [shape = 'u8[8192]{0}', space=vmem, size = 0x2000, scoped, tag = 'input window, operand 1, single buffered']
    #allocation3 [shape = 's32[2]{0}', space=sflag, size = 0x8, scoped, tag = 'scoped memory for tpu_custom_call.1']
    #allocation4 [shape = 'u8[8192]{0}', space=vmem, size = 0x2000, scoped, tag = 'input window, operand 2, single buffered']
    #allocation5 [shape = 's32[1]{0}', space=sflag, size = 0x4, scoped, tag = 'scoped memory for tpu_custom_call.1']
    %9 = vsyncpa [#allocation3], 0
    %10 = vsyncpa [#allocation5], 0
    loop: start=0, step=1, limit=4
    $region2: #{tpu_custom_call.1} parent=1 // loop_pre_header
      _
    $region3: #{tpu_custom_call.1} parent=1 // loop_header
      %s12 = sphi 0, %s16
      %p13 = scmp.ge.s32.totalorder %s12, 4
      %s20 = sphi 0, %s20
      %s22 = sphi 0, %s20
      %s23 = sphi 0, %s22
      %s37 = sphi 0, %s23
      %s41 = sphi 0, %s41
      %s43 = sphi 0, %s41
      %s44 = sphi 0, %s43
      %s58 = sphi 0, %s44
      %s62 = sphi 0, %s62
      %s64 = sphi 0, %s62
      %s65 = sphi 0, %s64
      %s79 = sphi 0, %s65
      %s85 = sphi 0, %s87
      %s88 = sphi 0, %s85
      %s89 = sphi 0, %s88
      %s105 = sphi 0, %s89
      %s111 = sphi 0, %s113
      %s114 = sphi 0, %s111
      %s115 = sphi 0, %s114
      %s131 = sphi 0, %s115
    $region4: #{tpu_custom_call.1} parent=1 // loop_header_branch
      %15 = sbr.rel (%p13) target = $region8
    $region5: #{tpu_custom_call.1} parent=1 // loop_body
      %s17 = ssub.s32 %s12, 1
      %s18 = ssub.s32 %s12, 2
      %s19 = sadd.s32 %s12, 1
      %s21 = sadd.s32 %s20, 1
      %p24 = scmp.eq.s32.totalorder %s12, 1
      %p25 = scmp.ne.s32.totalorder %s20, %s22
      %p26 = scmp.eq.s32.totalorder %s12, 0
      %p27 = por %p25, %p26
      %p28 = scmp.ne.s32.totalorder %s20, %s22
      %p29 = scmp.eq.s32.totalorder %s17, 1
      %p30 = por %p28, %p29
      %p31 = scmp.ne.s32.totalorder %s22, %s23
      %p32 = scmp.eq.s32.totalorder %s17, 0
      %p33 = por %p31, %p32
      %p34 = scmp.ne.s32.totalorder %s22, %s23
      %p35 = scmp.eq.s32.totalorder %s18, 1
      %p36 = por %p34, %p35
      %p38 = scmp.ne.s32.totalorder %s23, %s37
      %p39 = scmp.eq.s32.totalorder %s18, 0
      %p40 = por %p38, %p39
      %s42 = sadd.s32 %s41, 1
      %p45 = scmp.eq.s32.totalorder %s12, 1
      %p46 = scmp.ne.s32.totalorder %s41, %s43
      %p47 = scmp.eq.s32.totalorder %s12, 0
      %p48 = por %p46, %p47
      %p49 = scmp.ne.s32.totalorder %s41, %s43
      %p50 = scmp.eq.s32.totalorder %s17, 1
      %p51 = por %p49, %p50
      %p52 = scmp.ne.s32.totalorder %s43, %s44
      %p53 = scmp.eq.s32.totalorder %s17, 0
      %p54 = por %p52, %p53
      %p55 = scmp.ne.s32.totalorder %s43, %s44
      %p56 = scmp.eq.s32.totalorder %s18, 1
      %p57 = por %p55, %p56
      %p59 = scmp.ne.s32.totalorder %s44, %s58
      %p60 = scmp.eq.s32.totalorder %s18, 0
      %p61 = por %p59, %p60
      %s63 = sadd.s32 %s62, 1
      %p66 = scmp.eq.s32.totalorder %s12, 1
      %p67 = scmp.ne.s32.totalorder %s62, %s64
      %p68 = scmp.eq.s32.totalorder %s12, 0
      %p69 = por %p67, %p68
      %p70 = scmp.ne.s32.totalorder %s62, %s64
      %p71 = scmp.eq.s32.totalorder %s17, 1
      %p72 = por %p70, %p71
      %p73 = scmp.ne.s32.totalorder %s64, %s65
      %p74 = scmp.eq.s32.totalorder %s17, 0
      %p75 = por %p73, %p74
      %p76 = scmp.ne.s32.totalorder %s64, %s65
      %p77 = scmp.eq.s32.totalorder %s18, 1
      %p78 = por %p76, %p77
      %p80 = scmp.ne.s32.totalorder %s65, %s79
      %p81 = scmp.eq.s32.totalorder %s18, 0
      %p82 = por %p80, %p81
      %s83 = ssub.s32 %s12, %s19
      %p84 = scmp.eq.s32.totalorder %s83, 0
      %s86 = sadd.s32 %s85, 1
      %s87 = scalar_select %p84, %s85, %s86
      %p90 = pneg %p84
      %p91 = scmp.eq.s32.totalorder %s12, 1
      %p92 = por %p90, %p91
      %p93 = scmp.ne.s32.totalorder %s85, %s88
      %p94 = scmp.eq.s32.totalorder %s12, 0
      %p95 = por %p93, %p94
      %p96 = scmp.ne.s32.totalorder %s85, %s88
      %p97 = scmp.eq.s32.totalorder %s17, 1
      %p98 = por %p96, %p97
      %p99 = scmp.ne.s32.totalorder %s88, %s89
      %p100 = scmp.eq.s32.totalorder %s17, 0
      %p101 = por %p99, %p100
      %p102 = scmp.ne.s32.totalorder %s88, %s89
      %p103 = scmp.eq.s32.totalorder %s18, 1
      %p104 = por %p102, %p103
      %p106 = scmp.ne.s32.totalorder %s89, %s105
      %p107 = scmp.eq.s32.totalorder %s18, 0
      %p108 = por %p106, %p107
      %s109 = ssub.s32 %s12, %s19
      %p110 = scmp.eq.s32.totalorder %s109, 0
      %s112 = sadd.s32 %s111, 1
      %s113 = scalar_select %p110, %s111, %s112
      %p116 = pneg %p110
      %p117 = scmp.eq.s32.totalorder %s12, 1
      %p118 = por %p116, %p117
      %p119 = scmp.ne.s32.totalorder %s111, %s114
      %p120 = scmp.eq.s32.totalorder %s12, 0
      %p121 = por %p119, %p120
      %p122 = scmp.ne.s32.totalorder %s111, %s114
      %p123 = scmp.eq.s32.totalorder %s17, 1
      %p124 = por %p122, %p123
      %p125 = scmp.ne.s32.totalorder %s114, %s115
      %p126 = scmp.eq.s32.totalorder %s17, 0
      %p127 = por %p125, %p126
      %p128 = scmp.ne.s32.totalorder %s114, %s115
      %p129 = scmp.eq.s32.totalorder %s18, 1
      %p130 = por %p128, %p129
      %p132 = scmp.ne.s32.totalorder %s115, %s131
      %p133 = scmp.eq.s32.totalorder %s18, 0
      %p134 = por %p132, %p133
      %p135 = scmp.le.s32.totalorder 1, %s12
      %p136 = scmp.lt.s32.totalorder %s12, 3
      %p137 = pnand %p135, %p136
      %p138 = pneg %p137
      // Predicated region
      $region9: #{tpu_custom_call.1} parent=5 // pred_check
        _
      $region10: #{tpu_custom_call.1} parent=5 // pred_check_branch
        %140 = sbr.rel (%p137) target = $region12
      $region11: #{tpu_custom_call.1} parent=5 // pred_region
        %s141 = ssub.s32 %s12, 1
        // Predicated region
        $region13: #{tpu_custom_call.1} parent=11 // pred_check
          %p142 = pneg %p33
        $region14: #{tpu_custom_call.1} parent=11 // pred_check_branch
          %144 = sbr.rel (%p142) target = $region16
        $region15: #{tpu_custom_call.1} parent=11 // pred_region
          _
        $region16: #{tpu_custom_call.1} parent=11 // pred_fallthru
          _
        // Predicated region
        $region17: #{tpu_custom_call.1} parent=11 // pred_check
          %p145 = pneg %p54
        $region18: #{tpu_custom_call.1} parent=11 // pred_check_branch
          %147 = sbr.rel (%p145) target = $region20
        $region19: #{tpu_custom_call.1} parent=11 // pred_region
          %s149 = ssub.s32 256, 256
          %150 = vsyncadd [#allocation3], %s149
          %s151 = sshll.u32 [#allocation2], 4
          %s152 = int_to_ptr.vmem [resolvable:$true] %s151
          %157 = dma.hbm_to_vmem [thread:$0]  %s1, 256, %s152, [#allocation3], 128, 128, 8
        $region20: #{tpu_custom_call.1} parent=11 // pred_fallthru
          _
        // Predicated region
        $region21: #{tpu_custom_call.1} parent=11 // pred_check
          %p158 = pneg %p75
        $region22: #{tpu_custom_call.1} parent=11 // pred_check_branch
          %160 = sbr.rel (%p158) target = $region24
        $region23: #{tpu_custom_call.1} parent=11 // pred_region
          %s162 = ssub.s32 256, 256
          %163 = vsyncadd [#allocation5], %s162
          %s164 = sshll.u32 [#allocation4], 4
          %s165 = int_to_ptr.vmem [resolvable:$true] %s164
          %170 = dma.hbm_to_vmem [thread:$0]  %s2, 256, %s165, [#allocation5], 128, 128, 8
        $region24: #{tpu_custom_call.1} parent=11 // pred_fallthru
          _
      $region12: #{tpu_custom_call.1} parent=5 // pred_fallthru
        _
      %p171 = scmp.lt.s32.totalorder %s12, 2
      // Predicated region
      $region25: #{tpu_custom_call.1} parent=5 // pred_check
        %p172 = pneg %p171
      $region26: #{tpu_custom_call.1} parent=5 // pred_check_branch
        %174 = sbr.rel (%p172) target = $region28
      $region27: #{tpu_custom_call.1} parent=5 // pred_region
        // Predicated region
        $region29: #{tpu_custom_call.1} parent=27 // pred_check
          %p175 = pneg %p95
        $region30: #{tpu_custom_call.1} parent=27 // pred_check_branch
          %177 = sbr.rel (%p175) target = $region32
        $region31: #{tpu_custom_call.1} parent=27 // pred_region
          %p178 = scmp.lt.s32.totalorder %s12, 1
          %s179 = scalar_select %p178, %s12, 1
          %s180 = smul.addr %s179, 8
          %s181 = scalar_lea.vmem %s3, %s180
        $region32: #{tpu_custom_call.1} parent=27 // pred_fallthru
          _
      $region28: #{tpu_custom_call.1} parent=5 // pred_fallthru
        _
      %p182 = scmp.le.s32.totalorder 1, %s12
      %p183 = scmp.lt.s32.totalorder %s12, 3
      %p184 = pnand %p182, %p183
      %p185 = pneg %p184
      // Predicated region
      $region33: #{tpu_custom_call.1} parent=5 // pred_check
        _
      $region34: #{tpu_custom_call.1} parent=5 // pred_check_branch
        %187 = sbr.rel (%p184) target = $region36
      $region35: #{tpu_custom_call.1} parent=5 // pred_region
        %s188 = ssub.s32 %s12, 1
        // Predicated region
        $region37: #{tpu_custom_call.1} parent=35 // pred_check
          %p189 = pneg %p54
        $region38: #{tpu_custom_call.1} parent=35 // pred_check_branch
          %191 = sbr.rel (%p189) target = $region40
        $region39: #{tpu_custom_call.1} parent=35 // pred_region
          %192 = dma.done [#allocation3], 256
        $region40: #{tpu_custom_call.1} parent=35 // pred_fallthru
          _
        // Predicated region
        $region41: #{tpu_custom_call.1} parent=35 // pred_check
          %p193 = pneg %p75
        $region42: #{tpu_custom_call.1} parent=35 // pred_check_branch
          %195 = sbr.rel (%p193) target = $region44
        $region43: #{tpu_custom_call.1} parent=35 // pred_region
          %196 = dma.done [#allocation5], 256
        $region44: #{tpu_custom_call.1} parent=35 // pred_fallthru
          _
        %p197 = pneg %p33
        %p198 = pneg %p30
        %p199 = pneg %p54
        %p200 = pneg %p51
        %p201 = pneg %p75
        %p202 = pneg %p72
        %p203 = scmp.lt.s32.totalorder %s17, 1
        %s204 = scalar_select %p203, %s17, 1
        %s205 = smul.addr %s204, 8
        %s206 = scalar_lea.vmem %s3, %s205
        %p207 = pneg %p101
        %p208 = pneg %p98
        %p209 = pneg %p127
        %p210 = pneg %p124
        %p211 = scmp.lt.s32.totalorder %s17, 1
        %s212 = scalar_select %p211, %s17, 1
        %s213 = smul.addr %s212, 8
        %s214 = scalar_lea.vmem %s4, %s213
        %p215 = scmp.lt.s32.totalorder %s17, 1
        %s216 = scalar_select %p215, %s17, 1
        %s217 = smul.addr %s216, 8
        %s218 = scalar_lea.vmem %s3, %s217
        %p219 = scmp.lt.s32.totalorder %s17, 1
        %s220 = scalar_select %p219, %s17, 1
        %s221 = smul.addr %s220, 8
        %s222 = scalar_lea.vmem %s4, %s221
        %s223 = smul.u32 %s17, 8
        %s224 = scalar_lea.vmem %s0, %s223
        %v225 = vld [vmem:[%s224] sm:$0xff]
        %v226 = vmul.f32 %v225, 20.0
        %v227 = vld [vmem:[%s0] sm:$0xff]
        %v228 = vld [vmem:[%s0 + $0x8] sm:$0xff]
        %vm229 = vcmask 261120
        %v231 = vsel %vm229, %v226, 0
        %v234 = vsel %vm229, %v227, 0
        %v237 = vsel %vm229, %v228, 0
        %239 = vmatprep.subr.mxu0 0.0
        %240 = vmatpush1.xpose.msra.mxu0 %v234
        %241 = vmatprep.subr.mxu0 0.0
        %242 = vmatpush1.xpose.msra.mxu0 %v237
        %243 = vmatprep.subr.mxu0 0.0
        %244 = vmatpush1.xpose.msra.mxu0 0.0
        %245 = vmatprep.subr.mxu0 0.0
        %246 = vmatpush1.xpose.msra.mxu0 0.0
        %247 = vmatprep.subr.mxu0 0.0
        %248 = vmatpush1.xpose.msra.mxu0 0.0
        %249 = vmatprep.subr.mxu0 0.0
        %250 = vmatpush1.xpose.msra.mxu0 0.0
        %251 = vmatprep.subr.mxu0 0.0
        %252 = vmatpush1.xpose.msra.mxu0 0.0
        %253 = vmatprep.subr.mxu0 0.0
        %254 = vmatpush1.xpose.msra.mxu0 0.0
        %255 = vmatprep.subr.mxu0 0.0
        %256 = vmatpush1.xpose.msra.mxu0 0.0
        %257 = vmatprep.subr.mxu0 0.0
        %258 = vmatpush1.xpose.msra.mxu0 0.0
        %259 = vmatprep.subr.mxu0 0.0
        %260 = vmatpush1.xpose.msra.mxu0 0.0
        %261 = vmatprep.subr.mxu0 0.0
        %262 = vmatpush1.xpose.msra.mxu0 0.0
        %263 = vmatprep.subr.mxu0 0.0
        %264 = vmatpush1.xpose.msra.mxu0 0.0
        %265 = vmatprep.subr.mxu0 0.0
        %266 = vmatpush1.xpose.msra.mxu0 0.0
        %267 = vmatprep.subr.mxu0 0.0
        %268 = vmatpush1.xpose.msra.mxu0 0.0
        %269 = vmatprep.subr.mxu0 0.0
        %270 = vmatpush1.xpose.msra.mxu0 0.0
        %271 = vmatprep.subr.mxu0 0.0
        %272 = vmatpush1.xpose.msra.mxu0 0.0
        %273 = vmatprep.subr.mxu0 0.0
        %274 = vmatpush1.xpose.msra.mxu0 0.0
        %275 = vmatprep.subr.mxu0 0.0
        %276 = vmatpush1.xpose.msra.mxu0 0.0
        %277 = vmatprep.subr.mxu0 0.0
        %278 = vmatpush1.xpose.msra.mxu0 0.0
        %279 = vmatprep.subr.mxu0 0.0
        %280 = vmatpush1.xpose.msra.mxu0 0.0
        %281 = vmatprep.subr.mxu0 0.0
        %282 = vmatpush1.xpose.msra.mxu0 0.0
        %283 = vmatprep.subr.mxu0 0.0
        %284 = vmatpush1.xpose.msra.mxu0 0.0
        %285 = vmatprep.subr.mxu0 0.0
        %286 = vmatpush1.xpose.msra.mxu0 0.0
        %287 = vmatprep.subr.mxu0 0.0
        %288 = vmatpush1.xpose.msra.mxu0 0.0
        %289 = vmatprep.subr.mxu0 0.0
        %290 = vmatpush1.xpose.msra.mxu0 0.0
        %291 = vmatprep.subr.mxu0 0.0
        %292 = vmatpush1.xpose.msra.mxu0 0.0
        %293 = vmatprep.subr.mxu0 0.0
        %294 = vmatpush1.xpose.msra.mxu0 0.0
        %295 = vmatprep.subr.mxu0 0.0
        %296 = vmatpush1.xpose.msra.mxu0 0.0
        %297 = vmatprep.subr.mxu0 0.0
        %298 = vmatpush1.xpose.msra.mxu0 0.0
        %299 = vmatprep.subr.mxu0 0.0
        %300 = vmatpush1.xpose.msra.mxu0 0.0
        %301 = vmatprep.subr.mxu0 0.0
        %302 = vmatpush1.xpose.msra.mxu0 0.0
        %303 = vmatprep.mubr.f32.mxu0 0.0
        %304 = vmatmul.mubr.f32.gmra.mrb[0].mxu0 %v231
        %v305 = vpop.f32.mrb[0].mxu0
        %v306 = vadd.f32 0.0, %v305
        %v307 = vpop.f32.mrb[0].mxu0
        %308 = vdwg.mxu0
        %v309 = vld [vmem:[#allocation2] sm:$0xff]
        %v310 = vld [vmem:[#allocation2 + $0x8] sm:$0xff]
        %v312 = vsel %vm229, %v309, 0
        %v315 = vsel %vm229, %v310, 0
        %317 = vmatprep.subr.mxu0 0.0
        %318 = vmatpush1.xpose.msra.mxu0 %v312
        %319 = vmatprep.subr.mxu0 0.0
        %320 = vmatpush1.xpose.msra.mxu0 %v315
        %321 = vmatprep.subr.mxu0 0.0
        %322 = vmatpush1.xpose.msra.mxu0 0.0
        %323 = vmatprep.subr.mxu0 0.0
        %324 = vmatpush1.xpose.msra.mxu0 0.0
        %325 = vmatprep.subr.mxu0 0.0
        %326 = vmatpush1.xpose.msra.mxu0 0.0
        %327 = vmatprep.subr.mxu0 0.0
        %328 = vmatpush1.xpose.msra.mxu0 0.0
        %329 = vmatprep.subr.mxu0 0.0
        %330 = vmatpush1.xpose.msra.mxu0 0.0
        %331 = vmatprep.subr.mxu0 0.0
        %332 = vmatpush1.xpose.msra.mxu0 0.0
        %333 = vmatprep.subr.mxu0 0.0
        %334 = vmatpush1.xpose.msra.mxu0 0.0
        %335 = vmatprep.subr.mxu0 0.0
        %336 = vmatpush1.xpose.msra.mxu0 0.0
        %337 = vmatprep.subr.mxu0 0.0
        %338 = vmatpush1.xpose.msra.mxu0 0.0
        %339 = vmatprep.subr.mxu0 0.0
        %340 = vmatpush1.xpose.msra.mxu0 0.0
        %341 = vmatprep.subr.mxu0 0.0
        %342 = vmatpush1.xpose.msra.mxu0 0.0
        %343 = vmatprep.subr.mxu0 0.0
        %344 = vmatpush1.xpose.msra.mxu0 0.0
        %345 = vmatprep.subr.mxu0 0.0
        %346 = vmatpush1.xpose.msra.mxu0 0.0
        %347 = vmatprep.subr.mxu0 0.0
        %348 = vmatpush1.xpose.msra.mxu0 0.0
        %349 = vmatprep.subr.mxu0 0.0
        %350 = vmatpush1.xpose.msra.mxu0 0.0
        %351 = vmatprep.subr.mxu0 0.0
        %352 = vmatpush1.xpose.msra.mxu0 0.0
        %353 = vmatprep.subr.mxu0 0.0
        %354 = vmatpush1.xpose.msra.mxu0 0.0
        %355 = vmatprep.subr.mxu0 0.0
        %356 = vmatpush1.xpose.msra.mxu0 0.0
        %357 = vmatprep.subr.mxu0 0.0
        %358 = vmatpush1.xpose.msra.mxu0 0.0
        %359 = vmatprep.subr.mxu0 0.0
        %360 = vmatpush1.xpose.msra.mxu0 0.0
        %361 = vmatprep.subr.mxu0 0.0
        %362 = vmatpush1.xpose.msra.mxu0 0.0
        %363 = vmatprep.subr.mxu0 0.0
        %364 = vmatpush1.xpose.msra.mxu0 0.0
        %365 = vmatprep.subr.mxu0 0.0
        %366 = vmatpush1.xpose.msra.mxu0 0.0
        %367 = vmatprep.subr.mxu0 0.0
        %368 = vmatpush1.xpose.msra.mxu0 0.0
        %369 = vmatprep.subr.mxu0 0.0
        %370 = vmatpush1.xpose.msra.mxu0 0.0
        %371 = vmatprep.subr.mxu0 0.0
        %372 = vmatpush1.xpose.msra.mxu0 0.0
        %373 = vmatprep.subr.mxu0 0.0
        %374 = vmatpush1.xpose.msra.mxu0 0.0
        %375 = vmatprep.subr.mxu0 0.0
        %376 = vmatpush1.xpose.msra.mxu0 0.0
        %377 = vmatprep.subr.mxu0 0.0
        %378 = vmatpush1.xpose.msra.mxu0 0.0
        %379 = vmatprep.subr.mxu0 0.0
        %380 = vmatpush1.xpose.msra.mxu0 0.0
        %381 = vmatprep.mubr.f32.mxu0 0.0
        %382 = vmatmul.mubr.f32.gmra.mrb[0].mxu0 %v231
        %v383 = vpop.f32.mrb[0].mxu0
        %v384 = vadd.f32 0.0, %v383
        %v385 = vpop.f32.mrb[0].mxu0
        %386 = vdwg.mxu0
        %v387 = vld [vmem:[#allocation4] sm:$0xff]
        %v388 = vld [vmem:[#allocation4 + $0x8] sm:$0xff]
        %v390 = vsel %vm229, %v387, 0
        %v393 = vsel %vm229, %v388, 0
        %395 = vmatprep.subr.mxu0 0.0
        %396 = vmatpush1.xpose.msra.mxu0 %v390
        %397 = vmatprep.subr.mxu0 0.0
        %398 = vmatpush1.xpose.msra.mxu0 %v393
        %399 = vmatprep.subr.mxu0 0.0
        %400 = vmatpush1.xpose.msra.mxu0 0.0
        %401 = vmatprep.subr.mxu0 0.0
        %402 = vmatpush1.xpose.msra.mxu0 0.0
        %403 = vmatprep.subr.mxu0 0.0
        %404 = vmatpush1.xpose.msra.mxu0 0.0
        %405 = vmatprep.subr.mxu0 0.0
        %406 = vmatpush1.xpose.msra.mxu0 0.0
        %407 = vmatprep.subr.mxu0 0.0
        %408 = vmatpush1.xpose.msra.mxu0 0.0
        %409 = vmatprep.subr.mxu0 0.0
        %410 = vmatpush1.xpose.msra.mxu0 0.0
        %411 = vmatprep.subr.mxu0 0.0
        %412 = vmatpush1.xpose.msra.mxu0 0.0
        %413 = vmatprep.subr.mxu0 0.0
        %414 = vmatpush1.xpose.msra.mxu0 0.0
        %415 = vmatprep.subr.mxu0 0.0
        %416 = vmatpush1.xpose.msra.mxu0 0.0
        %417 = vmatprep.subr.mxu0 0.0
        %418 = vmatpush1.xpose.msra.mxu0 0.0
        %419 = vmatprep.subr.mxu0 0.0
        %420 = vmatpush1.xpose.msra.mxu0 0.0
        %421 = vmatprep.subr.mxu0 0.0
        %422 = vmatpush1.xpose.msra.mxu0 0.0
        %423 = vmatprep.subr.mxu0 0.0
        %424 = vmatpush1.xpose.msra.mxu0 0.0
        %425 = vmatprep.subr.mxu0 0.0
        %426 = vmatpush1.xpose.msra.mxu0 0.0
        %427 = vmatprep.subr.mxu0 0.0
        %428 = vmatpush1.xpose.msra.mxu0 0.0
        %429 = vmatprep.subr.mxu0 0.0
        %430 = vmatpush1.xpose.msra.mxu0 0.0
        %431 = vmatprep.subr.mxu0 0.0
        %432 = vmatpush1.xpose.msra.mxu0 0.0
        %433 = vmatprep.subr.mxu0 0.0
        %434 = vmatpush1.xpose.msra.mxu0 0.0
        %435 = vmatprep.subr.mxu0 0.0
        %436 = vmatpush1.xpose.msra.mxu0 0.0
        %437 = vmatprep.subr.mxu0 0.0
        %438 = vmatpush1.xpose.msra.mxu0 0.0
        %439 = vmatprep.subr.mxu0 0.0
        %440 = vmatpush1.xpose.msra.mxu0 0.0
        %441 = vmatprep.subr.mxu0 0.0
        %442 = vmatpush1.xpose.msra.mxu0 0.0
        %443 = vmatprep.subr.mxu0 0.0
        %444 = vmatpush1.xpose.msra.mxu0 0.0
        %445 = vmatprep.subr.mxu0 0.0
        %446 = vmatpush1.xpose.msra.mxu0 0.0
        %447 = vmatprep.subr.mxu0 0.0
        %448 = vmatpush1.xpose.msra.mxu0 0.0
        %449 = vmatprep.subr.mxu0 0.0
        %450 = vmatpush1.xpose.msra.mxu0 0.0
        %451 = vmatprep.subr.mxu0 0.0
        %452 = vmatpush1.xpose.msra.mxu0 0.0
        %453 = vmatprep.subr.mxu0 0.0
        %454 = vmatpush1.xpose.msra.mxu0 0.0
        %455 = vmatprep.subr.mxu0 0.0
        %456 = vmatpush1.xpose.msra.mxu0 0.0
        %457 = vmatprep.subr.mxu0 0.0
        %458 = vmatpush1.xpose.msra.mxu0 0.0
        %459 = vmatprep.mubr.f32.mxu0 0.0
        %460 = vmatmul.mubr.f32.gmra.mrb[0].mxu0 %v231
        %v461 = vpop.f32.mrb[0].mxu0
        %v462 = vadd.f32 0.0, %v461
        %v463 = vpop.f32.mrb[0].mxu0
        %464 = vdwg.mxu0
        %v465 = vlaneseq
        %v466 = vand.u32 %v465, 127
        %v467 = vlaneseq
        %v468 = vshrl.u32 %v467, 7
        %v469 = vstv %s223
        %v470 = vadd.s32 %v469, %v468
        %vm471 = vcmp.eq.s32.totalorder %v466, %v470
        %v472 = vsel %vm471, -inf, %v306
        %vm473 = vcmp.lt.s32.totalorder %v466, 8
        %v474 = vsel %vm473, %v472, -inf
        %v475 = vsel %vm473, %v384, -inf
        %v476 = vsel %vm473, %v462, -inf
        %v477 = vld [vmem:[%s218] sm:$0xff]
        %vm478 = vcmask 130048
        %v479 = vsel %vm478, %v474, -inf
        %480 = vmax.xlane.f32.xlu0 %v479
        %v481 = vpop.xlane.xlu0 %480
        %v482 = vsel %vm478, %v475, -inf
        %483 = vmax.xlane.f32.xlu0 %v482
        %v484 = vpop.xlane.xlu0 %483
        %v485 = vmax.f32 %v481, %v484
        %v486 = vsel %vm478, %v476, -inf
        %487 = vmax.xlane.f32.xlu0 %v486
        %v488 = vpop.xlane.xlu0 %487
        %v489 = vmax.f32 %v485, %v488
        %v490 = vsub.f32 %v474, %v489
        %v491 = vmul.f32 %v490, 1.442695
        %v492 = vpow.pop %v491
        %v493 = vsel %vm478, %v492, 0.0
        %494 = vadd.xlane.f32.xlu0 %v493
        %v495 = vpop.xlane.xlu0 %494
        %v496 = vadd.f32 %v495, 0.0
        %497 = vset.pattern.permute.xlu0 0
        %498 = vperm.xlu0 %497, %v477
        %v499 = vpop.permute.xlu0 %498
        %vm500 = vcmp.eq.s32.totalorder %v466, %v499
        %vm501 = vmand %vm500, %vm473
        %v502 = vsel %vm501, %v474, 0.0
        %v503 = vsel %vm478, %v502, 0.0
        %504 = vadd.xlane.f32.xlu0 %v503
        %v505 = vpop.xlane.xlu0 %504
        %v506 = vadd.f32 %v505, 0.0
        %v507 = vsub.f32 %v475, %v489
        %v508 = vmul.f32 %v507, 1.442695
        %v509 = vpow.pop %v508
        %v510 = vsel %vm478, %v509, 0.0
        %511 = vadd.xlane.f32.xlu0 %v510
        %v512 = vpop.xlane.xlu0 %511
        %v513 = vadd.f32 %v496, %v512
        %v514 = vsub.s32 %v477, 8
        %515 = vset.pattern.permute.xlu0 0
        %516 = vperm.xlu0 %515, %v514
        %v517 = vpop.permute.xlu0 %516
        %vm518 = vcmp.eq.s32.totalorder %v466, %v517
        %vm519 = vmand %vm518, %vm473
        %v520 = vsel %vm519, %v475, 0.0
        %v521 = vsel %vm478, %v520, 0.0
        %522 = vadd.xlane.f32.xlu0 %v521
        %v523 = vpop.xlane.xlu0 %522
        %v524 = vadd.f32 %v506, %v523
        %v525 = vsub.f32 %v476, %v489
        %v526 = vmul.f32 %v525, 1.442695
        %v527 = vpow.pop %v526
        %v528 = vsel %vm478, %v527, 0.0
        %529 = vadd.xlane.f32.xlu0 %v528
        %v530 = vpop.xlane.xlu0 %529
        %v531 = vadd.f32 %v513, %v530
        %v532 = vsub.s32 %v477, 16
        %533 = vset.pattern.permute.xlu0 0
        %534 = vperm.xlu0 %533, %v532
        %v535 = vpop.permute.xlu0 %534
        %vm536 = vcmp.eq.s32.totalorder %v466, %v535
        %vm537 = vmand %vm536, %vm473
        %v538 = vsel %vm537, %v476, 0.0
        %v539 = vsel %vm478, %v538, 0.0
        %540 = vadd.xlane.f32.xlu0 %v539
        %v541 = vpop.xlane.xlu0 %540
        %v542 = vadd.f32 %v524, %v541
        %v543 = vlog2.pop %v531
        %v544 = vmul.f32 %v543, 0.6931472
        %v545 = vadd.f32 %v489, %v544
        %v546 = vsub.f32 %v545, %v542
        %vm547 = vcmp.lt.s32.totalorder %v470, 8
        %v548 = vsel %vm547, %v546, 0.0
        %vm549 = vcmask 7168
        %550 = vst.msk [vmem:[%s222] sm:$0xff] %vm549, %v548
        %p551 = scmp.lt.s32.totalorder %s17, 1
        %s552 = scalar_select %p551, %s17, 1
        %s553 = smul.addr %s552, 8
        %s554 = scalar_lea.vmem %s4, %s553
        // Predicated region
        $region45: #{tpu_custom_call.1} parent=35 // pred_check
          %p555 = pneg %p124
        $region46: #{tpu_custom_call.1} parent=35 // pred_check_branch
          %557 = sbr.rel (%p555) target = $region48
        $region47: #{tpu_custom_call.1} parent=35 // pred_region
          _
        $region48: #{tpu_custom_call.1} parent=35 // pred_fallthru
          _
      $region36: #{tpu_custom_call.1} parent=5 // pred_fallthru
        _
      %p558 = scmp.le.s32.totalorder 2, %s12
      // Predicated region
      $region49: #{tpu_custom_call.1} parent=5 // pred_check
        %p559 = pneg %p558
      $region50: #{tpu_custom_call.1} parent=5 // pred_check_branch
        %561 = sbr.rel (%p559) target = $region52
      $region51: #{tpu_custom_call.1} parent=5 // pred_region
        %s562 = ssub.s32 %s12, 2
        // Predicated region
        $region53: #{tpu_custom_call.1} parent=51 // pred_check
          %p563 = pneg %p130
        $region54: #{tpu_custom_call.1} parent=51 // pred_check_branch
          %565 = sbr.rel (%p563) target = $region56
        $region55: #{tpu_custom_call.1} parent=51 // pred_region
          %p566 = scmp.lt.s32.totalorder %s18, 1
          %s567 = scalar_select %p566, %s18, 1
          %s568 = smul.addr %s567, 8
          %s569 = scalar_lea.vmem %s4, %s568
        $region56: #{tpu_custom_call.1} parent=51 // pred_fallthru
          _
      $region52: #{tpu_custom_call.1} parent=5 // pred_fallthru
        _
    $region6: #{tpu_custom_call.1} parent=1 // loop_footer
      %s16 = sadd.s32 1, %s12
    $region7: #{tpu_custom_call.1} parent=1 // loop_footer_branch
      %11 = sbr.rel target = $region3
    $region8: #{tpu_custom_call.1} parent=1 // loop_exit
      _
    %570 = vsyncpa [#allocation3], 1
    %s571 = scalar_lea.sflag [#allocation3], 1
    %572 = vsyncpa %s571, 1
    %573 = vsyncpa [#allocation5], 1

// kernel: tpu_custom_call.1
$region0: #{tpu_custom_call.1}
  #allocation0 [shape = 'u32[]', space=smem, size = 0x4, offset = 0x4, fixed_abs, tag = 'smem constant byte address 0x4 - core index']
  #allocation1 [shape = 'u32[144,128]{1,0:T(1,128)}', space=vmem, size = 0x12000, scoped, tag = 'internal scratch']
  %s0 = inlined_call_operand.vmem [shape: f32[16,32], index: 0, kind: input, shape index: {}]
  %s1 = inlined_call_operand.hbm [shape: f32[16,32], index: 1, kind: input, shape index: {}]
  %s2 = inlined_call_operand.hbm [shape: f32[16,32], index: 2, kind: input, shape index: {}]
  %s3 = inlined_call_operand.vmem [shape: s32[16,1], index: 3, kind: input, shape index: {}]
  %s4 = inlined_call_operand.vmem [shape: f32[16,1], index: 4, kind: output, shape index: {}]
  %s5 = sld [smem:[#allocation0]]
  $region57: #{tpu_custom_call.1} parent=0
    _
  %s7 = ssub.s32 1, %s5
  %s8 = scalar_select 0, %s7, %s5
  $region1: #{tpu_custom_call.1} parent=0
    #allocation2 [shape = 'u8[8192]{0}', space=vmem, size = 0x2000, scoped, tag = 'input window, operand 1, single buffered']
    #allocation3 [shape = 's32[2]{0}', space=sflag, size = 0x8, scoped, tag = 'scoped memory for tpu_custom_call.1']
    #allocation4 [shape = 'u8[8192]{0}', space=vmem, size = 0x2000, scoped, tag = 'input window, operand 2, single buffered']
    #allocation5 [shape = 's32[1]{0}', space=sflag, size = 0x4, scoped, tag = 'scoped memory for tpu_custom_call.1']
    %9 = vsyncpa [#allocation3], 0
    %10 = vsyncpa [#allocation5], 0
    loop: start=0, step=1, limit=4
    $region2: #{tpu_custom_call.1} parent=1 // loop_pre_header
      _
    $region3: #{tpu_custom_call.1} parent=1 // loop_header
      %s12 = sphi 0, %s16
      %p13 = scmp.ge.s32.totalorder %s12, 4
      %s20 = sphi 0, %s20
      %s22 = sphi 0, %s20
      %s23 = sphi 0, %s22
      %s37 = sphi 0, %s23
      %s41 = sphi 0, %s41
      %s43 = sphi 0, %s41
      %s44 = sphi 0, %s43
      %s58 = sphi 0, %s44
      %s62 = sphi 0, %s62
      %s64 = sphi 0, %s62
      %s65 = sphi 0, %s64
      %s79 = sphi 0, %s65
      %s85 = sphi 0, %s87
      %s88 = sphi 0, %s85
      %s89 = sphi 0, %s88
      %s105 = sphi 0, %s89
      %s111 = sphi 0, %s113
      %s114 = sphi 0, %s111
      %s115 = sphi 0, %s114
      %s131 = sphi 0, %s115
    $region4: #{tpu_custom_call.1} parent=1 // loop_header_branch
      %15 = sbr.rel (%p13) target = $region8
    $region5: #{tpu_custom_call.1} parent=1 // loop_body
      %s17 = ssub.s32 %s12, 1
      %s18 = ssub.s32 %s12, 2
      %s19 = sadd.s32 %s12, 1
      %s21 = sadd.s32 %s20, 1
      %p24 = scmp.eq.s32.totalorder %s12, 1
      %p25 = scmp.ne.s32.totalorder %s20, %s22
      %p26 = scmp.eq.s32.totalorder %s12, 0
      %p27 = por %p25, %p26
      %p28 = scmp.ne.s32.totalorder %s20, %s22
      %p29 = scmp.eq.s32.totalorder %s17, 1
      %p30 = por %p28, %p29
      %p31 = scmp.ne.s32.totalorder %s22, %s23
      %p32 = scmp.eq.s32.totalorder %s17, 0
      %p33 = por %p31, %p32
      %p34 = scmp.ne.s32.totalorder %s22, %s23
      %p35 = scmp.eq.s32.totalorder %s18, 1
      %p36 = por %p34, %p35
      %p38 = scmp.ne.s32.totalorder %s23, %s37
      %p39 = scmp.eq.s32.totalorder %s18, 0
      %p40 = por %p38, %p39
      %s42 = sadd.s32 %s41, 1
      %p45 = scmp.eq.s32.totalorder %s12, 1
      %p46 = scmp.ne.s32.totalorder %s41, %s43
      %p47 = scmp.eq.s32.totalorder %s12, 0
      %p48 = por %p46, %p47
      %p49 = scmp.ne.s32.totalorder %s41, %s43
      %p50 = scmp.eq.s32.totalorder %s17, 1
      %p51 = por %p49, %p50
      %p52 = scmp.ne.s32.totalorder %s43, %s44
      %p53 = scmp.eq.s32.totalorder %s17, 0
      %p54 = por %p52, %p53
      %p55 = scmp.ne.s32.totalorder %s43, %s44
      %p56 = scmp.eq.s32.totalorder %s18, 1
      %p57 = por %p55, %p56
      %p59 = scmp.ne.s32.totalorder %s44, %s58
      %p60 = scmp.eq.s32.totalorder %s18, 0
      %p61 = por %p59, %p60
      %s63 = sadd.s32 %s62, 1
      %p66 = scmp.eq.s32.totalorder %s12, 1
      %p67 = scmp.ne.s32.totalorder %s62, %s64
      %p68 = scmp.eq.s32.totalorder %s12, 0
      %p69 = por %p67, %p68
      %p70 = scmp.ne.s32.totalorder %s62, %s64
      %p71 = scmp.eq.s32.totalorder %s17, 1
      %p72 = por %p70, %p71
      %p73 = scmp.ne.s32.totalorder %s64, %s65
      %p74 = scmp.eq.s32.totalorder %s17, 0
      %p75 = por %p73, %p74
      %p76 = scmp.ne.s32.totalorder %s64, %s65
      %p77 = scmp.eq.s32.totalorder %s18, 1
      %p78 = por %p76, %p77
      %p80 = scmp.ne.s32.totalorder %s65, %s79
      %p81 = scmp.eq.s32.totalorder %s18, 0
      %p82 = por %p80, %p81
      %s83 = ssub.s32 %s12, %s19
      %p84 = scmp.eq.s32.totalorder %s83, 0
      %s86 = sadd.s32 %s85, 1
      %s87 = scalar_select %p84, %s85, %s86
      %p90 = pneg %p84
      %p91 = scmp.eq.s32.totalorder %s12, 1
      %p92 = por %p90, %p91
      %p93 = scmp.ne.s32.totalorder %s85, %s88
      %p94 = scmp.eq.s32.totalorder %s12, 0
      %p95 = por %p93, %p94
      %p96 = scmp.ne.s32.totalorder %s85, %s88
      %p97 = scmp.eq.s32.totalorder %s17, 1
      %p98 = por %p96, %p97
      %p99 = scmp.ne.s32.totalorder %s88, %s89
      %p100 = scmp.eq.s32.totalorder %s17, 0
      %p101 = por %p99, %p100
      %p102 = scmp.ne.s32.totalorder %s88, %s89
      %p103 = scmp.eq.s32.totalorder %s18, 1
      %p104 = por %p102, %p103
      %p106 = scmp.ne.s32.totalorder %s89, %s105
      %p107 = scmp.eq.s32.totalorder %s18, 0
      %p108 = por %p106, %p107
      %s109 = ssub.s32 %s12, %s19
      %p110 = scmp.eq.s32.totalorder %s109, 0
      %s112 = sadd.s32 %s111, 1
      %s113 = scalar_select %p110, %s111, %s112
      %p116 = pneg %p110
      %p117 = scmp.eq.s32.totalorder %s12, 1
      %p118 = por %p116, %p117
      %p119 = scmp.ne.s32.totalorder %s111, %s114
      %p120 = scmp.eq.s32.totalorder %s12, 0
      %p121 = por %p119, %p120
      %p122 = scmp.ne.s32.totalorder %s111, %s114
      %p123 = scmp.eq.s32.totalorder %s17, 1
      %p124 = por %p122, %p123
      %p125 = scmp.ne.s32.totalorder %s114, %s115
      %p126 = scmp.eq.s32.totalorder %s17, 0
      %p127 = por %p125, %p126
      %p128 = scmp.ne.s32.totalorder %s114, %s115
      %p129 = scmp.eq.s32.totalorder %s18, 1
      %p130 = por %p128, %p129
      %p132 = scmp.ne.s32.totalorder %s115, %s131
      %p133 = scmp.eq.s32.totalorder %s18, 0
      %p134 = por %p132, %p133
      %p135 = scmp.le.s32.totalorder 1, %s12
      %p136 = scmp.lt.s32.totalorder %s12, 3
      %p137 = pnand %p135, %p136
      %p138 = pneg %p137
      // Predicated region
      $region9: #{tpu_custom_call.1} parent=5 // pred_check
        _
      $region10: #{tpu_custom_call.1} parent=5 // pred_check_branch
        %140 = sbr.rel (%p137) target = $region12
      $region11: #{tpu_custom_call.1} parent=5 // pred_region
        %s141 = ssub.s32 %s12, 1
        // Predicated region
        $region13: #{tpu_custom_call.1} parent=11 // pred_check
          %p142 = pneg %p33
        $region14: #{tpu_custom_call.1} parent=11 // pred_check_branch
          %144 = sbr.rel (%p142) target = $region16
        $region15: #{tpu_custom_call.1} parent=11 // pred_region
          _
        $region16: #{tpu_custom_call.1} parent=11 // pred_fallthru
          _
        // Predicated region
        $region17: #{tpu_custom_call.1} parent=11 // pred_check
          %p145 = pneg %p54
        $region18: #{tpu_custom_call.1} parent=11 // pred_check_branch
          %147 = sbr.rel (%p145) target = $region20
        $region19: #{tpu_custom_call.1} parent=11 // pred_region
          %s149 = ssub.s32 256, 256
          %150 = vsyncadd [#allocation3], %s149
          %s151 = sshll.u32 [#allocation2], 4
          %s152 = int_to_ptr.vmem [resolvable:$true] %s151
          %157 = dma.hbm_to_vmem [thread:$0]  %s1, 256, %s152, [#allocation3], 128, 128, 8
        $region20: #{tpu_custom_call.1} parent=11 // pred_fallthru
          _
        // Predicated region
        $region21: #{tpu_custom_call.1} parent=11 // pred_check
          %p158 = pneg %p75
        $region22: #{tpu_custom_call.1} parent=11 // pred_check_branch
          %160 = sbr.rel (%p158) target = $region24
        $region23: #{tpu_custom_call.1} parent=11 // pred_region
          %s162 = ssub.s32 256, 256
          %163 = vsyncadd [#allocation5], %s162
          %s164 = sshll.u32 [#allocation4], 4
          %s165 = int_to_ptr.vmem [resolvable:$true] %s164
          %170 = dma.hbm_to_vmem [thread:$0]  %s2, 256, %s165, [#allocation5], 128, 128, 8
        $region24: #{tpu_custom_call.1} parent=11 // pred_fallthru
          _
      $region12: #{tpu_custom_call.1} parent=5 // pred_fallthru
        _
      %p171 = scmp.lt.s32.totalorder %s12, 2
      // Predicated region
      $region25: #{tpu_custom_call.1} parent=5 // pred_check
        %p172 = pneg %p171
      $region26: #{tpu_custom_call.1} parent=5 // pred_check_branch
        %174 = sbr.rel (%p172) target = $region28
      $region27: #{tpu_custom_call.1} parent=5 // pred_region
        // Predicated region
        $region29: #{tpu_custom_call.1} parent=27 // pred_check
          %p175 = pneg %p95
        $region30: #{tpu_custom_call.1} parent=27 // pred_check_branch
          %177 = sbr.rel (%p175) target = $region32
        $region31: #{tpu_custom_call.1} parent=27 // pred_region
          %p178 = scmp.lt.s32.totalorder %s12, 1
          %s179 = scalar_select %p178, %s12, 1
          %s180 = smul.addr %s179, 8
          %s181 = scalar_lea.vmem %s3, %s180
        $region32: #{tpu_custom_call.1} parent=27 // pred_fallthru
          _
      $region28: #{tpu_custom_call.1} parent=5 // pred_fallthru
        _
      %p182 = scmp.le.s32.totalorder 1, %s12
      %p183 = scmp.lt.s32.totalorder %s12, 3
      %p184 = pnand %p182, %p183
      %p185 = pneg %p184
      // Predicated region
      $region33: #{tpu_custom_call.1} parent=5 // pred_check
        _
      $region34: #{tpu_custom_call.1} parent=5 // pred_check_branch
        %187 = sbr.rel (%p184) target = $region36
      $region35: #{tpu_custom_call.1} parent=5 // pred_region
        %s188 = ssub.s32 %s12, 1
        // Predicated region
        $region37: #{tpu_custom_call.1} parent=35 // pred_check
          %p189 = pneg %p54
        $region38: #{tpu_custom_call.1} parent=35 // pred_check_branch
          %191 = sbr.rel (%p189) target = $region40
        $region39: #{tpu_custom_call.1} parent=35 // pred_region
          %192 = dma.done [#allocation3], 256
        $region40: #{tpu_custom_call.1} parent=35 // pred_fallthru
          _
        // Predicated region
        $region41: #{tpu_custom_call.1} parent=35 // pred_check
          %p193 = pneg %p75
        $region42: #{tpu_custom_call.1} parent=35 // pred_check_branch
          %195 = sbr.rel (%p193) target = $region44
        $region43: #{tpu_custom_call.1} parent=35 // pred_region
          %196 = dma.done [#allocation5], 256
        $region44: #{tpu_custom_call.1} parent=35 // pred_fallthru
          _
        %p197 = pneg %p33
        %p198 = pneg %p30
        %p199 = pneg %p54
        %p200 = pneg %p51
        %p201 = pneg %p75
        %p202 = pneg %p72
        %p203 = scmp.lt.s32.totalorder %s17, 1
        %s204 = scalar_select %p203, %s17, 1
        %s205 = smul.addr %s204, 8
        %s206 = scalar_lea.vmem %s3, %s205
        %p207 = pneg %p101
        %p208 = pneg %p98
        %p209 = pneg %p127
        %p210 = pneg %p124
        %p211 = scmp.lt.s32.totalorder %s17, 1
        %s212 = scalar_select %p211, %s17, 1
        %s213 = smul.addr %s212, 8
        %s214 = scalar_lea.vmem %s4, %s213
        %p215 = scmp.lt.s32.totalorder %s17, 1
        %s216 = scalar_select %p215, %s17, 1
        %s217 = smul.addr %s216, 8
        %s218 = scalar_lea.vmem %s3, %s217
        %p219 = scmp.lt.s32.totalorder %s17, 1
        %s220 = scalar_select %p219, %s17, 1
        %s221 = smul.addr %s220, 8
        %s222 = scalar_lea.vmem %s4, %s221
        %s223 = smul.u32 %s17, 8
        %s224 = scalar_lea.vmem %s0, %s223
        %v225 = vld [vmem:[%s224] sm:$0xff]
        %v226 = vmul.f32 %v225, 20.0
        %v227 = vld [vmem:[%s0] sm:$0xff]
        %v228 = vld [vmem:[%s0 + $0x8] sm:$0xff]
        %vm229 = vcmask 261120
        %v231 = vsel %vm229, %v226, 0
        %v234 = vsel %vm229, %v227, 0
        %v237 = vsel %vm229, %v228, 0
        %239 = vmatprep.subr.mxu0 0.0
        %240 = vmatpush1.xpose.msra.mxu0 %v234
        %241 = vmatprep.subr.mxu0 0.0
        %242 = vmatpush1.xpose.msra.mxu0 %v237
        %243 = vmatprep.subr.mxu0 0.0
        %244 = vmatpush1.xpose.msra.mxu0 0.0
        %245 = vmatprep.subr.mxu0 0.0
        %246 = vmatpush1.xpose.msra.mxu0 0.0
        %247 = vmatprep.subr.mxu0 0.0
        %248 = vmatpush1.xpose.msra.mxu0 0.0
        %249 = vmatprep.subr.mxu0 0.0
        %250 = vmatpush1.xpose.msra.mxu0 0.0
        %251 = vmatprep.subr.mxu0 0.0
        %252 = vmatpush1.xpose.msra.mxu0 0.0
        %253 = vmatprep.subr.mxu0 0.0
        %254 = vmatpush1.xpose.msra.mxu0 0.0
        %255 = vmatprep.subr.mxu0 0.0
        %256 = vmatpush1.xpose.msra.mxu0 0.0
        %257 = vmatprep.subr.mxu0 0.0
        %258 = vmatpush1.xpose.msra.mxu0 0.0
        %259 = vmatprep.subr.mxu0 0.0
        %260 = vmatpush1.xpose.msra.mxu0 0.0
        %261 = vmatprep.subr.mxu0 0.0
        %262 = vmatpush1.xpose.msra.mxu0 0.0
        %263 = vmatprep.subr.mxu0 0.0
        %264 = vmatpush1.xpose.msra.mxu0 0.0
        %265 = vmatprep.subr.mxu0 0.0
        %266 = vmatpush1.xpose.msra.mxu0 0.0
        %267 = vmatprep.subr.mxu0 0.0
        %268 = vmatpush1.xpose.msra.mxu0 0.0
        %269 = vmatprep.subr.mxu0 0.0
        %270 = vmatpush1.xpose.msra.mxu0 0.0
        %271 = vmatprep.subr.mxu0 0.0
        %272 = vmatpush1.xpose.msra.mxu0 0.0
        %273 = vmatprep.subr.mxu0 0.0
        %274 = vmatpush1.xpose.msra.mxu0 0.0
        %275 = vmatprep.subr.mxu0 0.0
        %276 = vmatpush1.xpose.msra.mxu0 0.0
        %277 = vmatprep.subr.mxu0 0.0
        %278 = vmatpush1.xpose.msra.mxu0 0.0
        %279 = vmatprep.subr.mxu0 0.0
        %280 = vmatpush1.xpose.msra.mxu0 0.0
        %281 = vmatprep.subr.mxu0 0.0
        %282 = vmatpush1.xpose.msra.mxu0 0.0
        %283 = vmatprep.subr.mxu0 0.0
        %284 = vmatpush1.xpose.msra.mxu0 0.0
        %285 = vmatprep.subr.mxu0 0.0
        %286 = vmatpush1.xpose.msra.mxu0 0.0
        %287 = vmatprep.subr.mxu0 0.0
        %288 = vmatpush1.xpose.msra.mxu0 0.0
        %289 = vmatprep.subr.mxu0 0.0
        %290 = vmatpush1.xpose.msra.mxu0 0.0
        %291 = vmatprep.subr.mxu0 0.0
        %292 = vmatpush1.xpose.msra.mxu0 0.0
        %293 = vmatprep.subr.mxu0 0.0
        %294 = vmatpush1.xpose.msra.mxu0 0.0
        %295 = vmatprep.subr.mxu0 0.0
        %296 = vmatpush1.xpose.msra.mxu0 0.0
        %297 = vmatprep.subr.mxu0 0.0
        %298 = vmatpush1.xpose.msra.mxu0 0.0
        %299 = vmatprep.subr.mxu0 0.0
        %300 = vmatpush1.xpose.msra.mxu0 0.0
        %301 = vmatprep.subr.mxu0 0.0
        %302 = vmatpush1.xpose.msra.mxu0 0.0
        %303 = vmatprep.mubr.f32.mxu0 0.0
        %304 = vmatmul.mubr.f32.gmra.mrb[0].mxu0 %v231
        %v305 = vpop.f32.mrb[0].mxu0
        %v306 = vadd.f32 0.0, %v305
        %v307 = vpop.f32.mrb[0].mxu0
        %308 = vdwg.mxu0
        %v309 = vld [vmem:[#allocation2] sm:$0xff]
        %v310 = vld [vmem:[#allocation2 + $0x8] sm:$0xff]
        %v312 = vsel %vm229, %v309, 0
        %v315 = vsel %vm229, %v310, 0
        %317 = vmatprep.subr.mxu0 0.0
        %318 = vmatpush1.xpose.msra.mxu0 %v312
        %319 = vmatprep.subr.mxu0 0.0
        %320 = vmatpush1.xpose.msra.mxu0 %v315
        %321 = vmatprep.subr.mxu0 0.0
        %322 = vmatpush1.xpose.msra.mxu0 0.0
        %323 = vmatprep.subr.mxu0 0.0
        %324 = vmatpush1.xpose.msra.mxu0 0.0
        %325 = vmatprep.subr.mxu0 0.0
        %326 = vmatpush1.xpose.msra.mxu0 0.0
        %327 = vmatprep.subr.mxu0 0.0
        %328 = vmatpush1.xpose.msra.mxu0 0.0
        %329 = vmatprep.subr.mxu0 0.0
        %330 = vmatpush1.xpose.msra.mxu0 0.0
        %331 = vmatprep.subr.mxu0 0.0
        %332 = vmatpush1.xpose.msra.mxu0 0.0
        %333 = vmatprep.subr.mxu0 0.0
        %334 = vmatpush1.xpose.msra.mxu0 0.0
        %335 = vmatprep.subr.mxu0 0.0
        %336 = vmatpush1.xpose.msra.mxu0 0.0
        %337 = vmatprep.subr.mxu0 0.0
        %338 = vmatpush1.xpose.msra.mxu0 0.0
        %339 = vmatprep.subr.mxu0 0.0
        %340 = vmatpush1.xpose.msra.mxu0 0.0
        %341 = vmatprep.subr.mxu0 0.0
        %342 = vmatpush1.xpose.msra.mxu0 0.0
        %343 = vmatprep.subr.mxu0 0.0
        %344 = vmatpush1.xpose.msra.mxu0 0.0
        %345 = vmatprep.subr.mxu0 0.0
        %346 = vmatpush1.xpose.msra.mxu0 0.0
        %347 = vmatprep.subr.mxu0 0.0
        %348 = vmatpush1.xpose.msra.mxu0 0.0
        %349 = vmatprep.subr.mxu0 0.0
        %350 = vmatpush1.xpose.msra.mxu0 0.0
        %351 = vmatprep.subr.mxu0 0.0
        %352 = vmatpush1.xpose.msra.mxu0 0.0
        %353 = vmatprep.subr.mxu0 0.0
        %354 = vmatpush1.xpose.msra.mxu0 0.0
        %355 = vmatprep.subr.mxu0 0.0
        %356 = vmatpush1.xpose.msra.mxu0 0.0
        %357 = vmatprep.subr.mxu0 0.0
        %358 = vmatpush1.xpose.msra.mxu0 0.0
        %359 = vmatprep.subr.mxu0 0.0
        %360 = vmatpush1.xpose.msra.mxu0 0.0
        %361 = vmatprep.subr.mxu0 0.0
        %362 = vmatpush1.xpose.msra.mxu0 0.0
        %363 = vmatprep.subr.mxu0 0.0
        %364 = vmatpush1.xpose.msra.mxu0 0.0
        %365 = vmatprep.subr.mxu0 0.0
        %366 = vmatpush1.xpose.msra.mxu0 0.0
        %367 = vmatprep.subr.mxu0 0.0
        %368 = vmatpush1.xpose.msra.mxu0 0.0
        %369 = vmatprep.subr.mxu0 0.0
        %370 = vmatpush1.xpose.msra.mxu0 0.0
        %371 = vmatprep.subr.mxu0 0.0
        %372 = vmatpush1.xpose.msra.mxu0 0.0
        %373 = vmatprep.subr.mxu0 0.0
        %374 = vmatpush1.xpose.msra.mxu0 0.0
        %375 = vmatprep.subr.mxu0 0.0
        %376 = vmatpush1.xpose.msra.mxu0 0.0
        %377 = vmatprep.subr.mxu0 0.0
        %378 = vmatpush1.xpose.msra.mxu0 0.0
        %379 = vmatprep.subr.mxu0 0.0
        %380 = vmatpush1.xpose.msra.mxu0 0.0
        %381 = vmatprep.mubr.f32.mxu0 0.0
        %382 = vmatmul.mubr.f32.gmra.mrb[0].mxu0 %v231
        %v383 = vpop.f32.mrb[0].mxu0
        %v384 = vadd.f32 0.0, %v383
        %v385 = vpop.f32.mrb[0].mxu0
        %386 = vdwg.mxu0
        %v387 = vld [vmem:[#allocation4] sm:$0xff]
        %v388 = vld [vmem:[#allocation4 + $0x8] sm:$0xff]
        %v390 = vsel %vm229, %v387, 0
        %v393 = vsel %vm229, %v388, 0
        %395 = vmatprep.subr.mxu0 0.0
        %396 = vmatpush1.xpose.msra.mxu0 %v390
        %397 = vmatprep.subr.mxu0 0.0
        %398 = vmatpush1.xpose.msra.mxu0 %v393
        %399 = vmatprep.subr.mxu0 0.0
        %400 = vmatpush1.xpose.msra.mxu0 0.0
        %401 = vmatprep.subr.mxu0 0.0
        %402 = vmatpush1.xpose.msra.mxu0 0.0
        %403 = vmatprep.subr.mxu0 0.0
        %404 = vmatpush1.xpose.msra.mxu0 0.0
        %405 = vmatprep.subr.mxu0 0.0
        %406 = vmatpush1.xpose.msra.mxu0 0.0
        %407 = vmatprep.subr.mxu0 0.0
        %408 = vmatpush1.xpose.msra.mxu0 0.0
        %409 = vmatprep.subr.mxu0 0.0
        %410 = vmatpush1.xpose.msra.mxu0 0.0
        %411 = vmatprep.subr.mxu0 0.0
        %412 = vmatpush1.xpose.msra.mxu0 0.0
        %413 = vmatprep.subr.mxu0 0.0
        %414 = vmatpush1.xpose.msra.mxu0 0.0
        %415 = vmatprep.subr.mxu0 0.0
        %416 = vmatpush1.xpose.msra.mxu0 0.0
        %417 = vmatprep.subr.mxu0 0.0
        %418 = vmatpush1.xpose.msra.mxu0 0.0
        %419 = vmatprep.subr.mxu0 0.0
        %420 = vmatpush1.xpose.msra.mxu0 0.0
        %421 = vmatprep.subr.mxu0 0.0
        %422 = vmatpush1.xpose.msra.mxu0 0.0
        %423 = vmatprep.subr.mxu0 0.0
        %424 = vmatpush1.xpose.msra.mxu0 0.0
        %425 = vmatprep.subr.mxu0 0.0
        %426 = vmatpush1.xpose.msra.mxu0 0.0
        %427 = vmatprep.subr.mxu0 0.0
        %428 = vmatpush1.xpose.msra.mxu0 0.0
        %429 = vmatprep.subr.mxu0 0.0
        %430 = vmatpush1.xpose.msra.mxu0 0.0
        %431 = vmatprep.subr.mxu0 0.0
        %432 = vmatpush1.xpose.msra.mxu0 0.0
        %433 = vmatprep.subr.mxu0 0.0
        %434 = vmatpush1.xpose.msra.mxu0 0.0
        %435 = vmatprep.subr.mxu0 0.0
        %436 = vmatpush1.xpose.msra.mxu0 0.0
        %437 = vmatprep.subr.mxu0 0.0
        %438 = vmatpush1.xpose.msra.mxu0 0.0
        %439 = vmatprep.subr.mxu0 0.0
        %440 = vmatpush1.xpose.msra.mxu0 0.0
        %441 = vmatprep.subr.mxu0 0.0
        %442 = vmatpush1.xpose.msra.mxu0 0.0
        %443 = vmatprep.subr.mxu0 0.0
        %444 = vmatpush1.xpose.msra.mxu0 0.0
        %445 = vmatprep.subr.mxu0 0.0
        %446 = vmatpush1.xpose.msra.mxu0 0.0
        %447 = vmatprep.subr.mxu0 0.0
        %448 = vmatpush1.xpose.msra.mxu0 0.0
        %449 = vmatprep.subr.mxu0 0.0
        %450 = vmatpush1.xpose.msra.mxu0 0.0
        %451 = vmatprep.subr.mxu0 0.0
        %452 = vmatpush1.xpose.msra.mxu0 0.0
        %453 = vmatprep.subr.mxu0 0.0
        %454 = vmatpush1.xpose.msra.mxu0 0.0
        %455 = vmatprep.subr.mxu0 0.0
        %456 = vmatpush1.xpose.msra.mxu0 0.0
        %457 = vmatprep.subr.mxu0 0.0
        %458 = vmatpush1.xpose.msra.mxu0 0.0
        %459 = vmatprep.mubr.f32.mxu0 0.0
        %460 = vmatmul.mubr.f32.gmra.mrb[0].mxu0 %v231
        %v461 = vpop.f32.mrb[0].mxu0
        %v462 = vadd.f32 0.0, %v461
        %v463 = vpop.f32.mrb[0].mxu0
        %464 = vdwg.mxu0
        %v465 = vlaneseq
        %v466 = vand.u32 %v465, 127
        %v467 = vlaneseq
        %v468 = vshrl.u32 %v467, 7
        %v469 = vstv %s223
        %v470 = vadd.s32 %v469, %v468
        %vm471 = vcmp.eq.s32.totalorder %v466, %v470
        %v472 = vsel %vm471, -inf, %v306
        %vm473 = vcmp.lt.s32.totalorder %v466, 8
        %v474 = vsel %vm473, %v472, -inf
        %v475 = vsel %vm473, %v384, -inf
        %v476 = vsel %vm473, %v462, -inf
        %v477 = vld [vmem:[%s218] sm:$0xff]
        %vm478 = vcmask 130048
        %v479 = vsel %vm478, %v474, -inf
        %480 = vmax.xlane.f32.xlu0 %v479
        %v481 = vpop.xlane.xlu0 %480
        %v482 = vsel %vm478, %v475, -inf
        %483 = vmax.xlane.f32.xlu0 %v482
        %v484 = vpop.xlane.xlu0 %483
        %v485 = vmax.f32 %v481, %v484
        %v486 = vsel %vm478, %v476, -inf
        %487 = vmax.xlane.f32.xlu0 %v486
        %v488 = vpop.xlane.xlu0 %487
        %v489 = vmax.f32 %v485, %v488
        %v490 = vsub.f32 %v474, %v489
        %v491 = vmul.f32 %v490, 1.442695
        %v492 = vpow.pop %v491
        %v493 = vsel %vm478, %v492, 0.0
        %494 = vadd.xlane.f32.xlu0 %v493
        %v495 = vpop.xlane.xlu0 %494
        %v496 = vadd.f32 %v495, 0.0
        %497 = vset.pattern.permute.xlu0 0
        %498 = vperm.xlu0 %497, %v477
        %v499 = vpop.permute.xlu0 %498
        %vm500 = vcmp.eq.s32.totalorder %v466, %v499
        %vm501 = vmand %vm500, %vm473
        %v502 = vsel %vm501, %v474, 0.0
        %v503 = vsel %vm478, %v502, 0.0
        %504 = vadd.xlane.f32.xlu0 %v503
        %v505 = vpop.xlane.xlu0 %504
        %v506 = vadd.f32 %v505, 0.0
        %v507 = vsub.f32 %v475, %v489
        %v508 = vmul.f32 %v507, 1.442695
        %v509 = vpow.pop %v508
        %v510 = vsel %vm478, %v509, 0.0
        %511 = vadd.xlane.f32.xlu0 %v510
        %v512 = vpop.xlane.xlu0 %511
        %v513 = vadd.f32 %v496, %v512
        %v514 = vsub.s32 %v477, 8
        %515 = vset.pattern.permute.xlu0 0
        %516 = vperm.xlu0 %515, %v514
        %v517 = vpop.permute.xlu0 %516
        %vm518 = vcmp.eq.s32.totalorder %v466, %v517
        %vm519 = vmand %vm518, %vm473
        %v520 = vsel %vm519, %v475, 0.0
        %v521 = vsel %vm478, %v520, 0.0
        %522 = vadd.xlane.f32.xlu0 %v521
        %v523 = vpop.xlane.xlu0 %522
        %v524 = vadd.f32 %v506, %v523
        %v525 = vsub.f32 %v476, %v489
        %v526 = vmul.f32 %v525, 1.442695
        %v527 = vpow.pop %v526
        %v528 = vsel %vm478, %v527, 0.0
        %529 = vadd.xlane.f32.xlu0 %v528
        %v530 = vpop.xlane.xlu0 %529
        %v531 = vadd.f32 %v513, %v530
        %v532 = vsub.s32 %v477, 16
        %533 = vset.pattern.permute.xlu0 0
        %534 = vperm.xlu0 %533, %v532
        %v535 = vpop.permute.xlu0 %534
        %vm536 = vcmp.eq.s32.totalorder %v466, %v535
        %vm537 = vmand %vm536, %vm473
        %v538 = vsel %vm537, %v476, 0.0
        %v539 = vsel %vm478, %v538, 0.0
        %540 = vadd.xlane.f32.xlu0 %v539
        %v541 = vpop.xlane.xlu0 %540
        %v542 = vadd.f32 %v524, %v541
        %v543 = vlog2.pop %v531
        %v544 = vmul.f32 %v543, 0.6931472
        %v545 = vadd.f32 %v489, %v544
        %v546 = vsub.f32 %v545, %v542
        %vm547 = vcmp.lt.s32.totalorder %v470, 8
        %v548 = vsel %vm547, %v546, 0.0
        %vm549 = vcmask 7168
        %550 = vst.msk [vmem:[%s222] sm:$0xff] %vm549, %v548
        %p551 = scmp.lt.s32.totalorder %s17, 1
        %s552 = scalar_select %p551, %s17, 1
        %s553 = smul.addr %s552, 8
        %s554 = scalar_lea.vmem %s4, %s553
        // Predicated region
        $region45: #{tpu_custom_call.1} parent=35 // pred_check
          %p555 = pneg %p124
        $region46: #{tpu_custom_call.1} parent=35 // pred_check_branch
          %557 = sbr.rel (%p555) target = $region48
        $region47: #{tpu_custom_call.1} parent=35 // pred_region
          _
        $region48: #{tpu_custom_call.1} parent=35 // pred_fallthru
          _
      $region36: #{tpu_custom_call.1} parent=5 // pred_fallthru
        _
      %p558 = scmp.le.s32.totalorder 2, %s12
      // Predicated region
      $region49: #{tpu_custom_call.1} parent=5 // pred_check
        %p559 = pneg %p558
      $region50: #{tpu_custom_call.1} parent=5 // pred_check_branch
        %561 = sbr.rel (%p559) target = $region52
      $region51: #{tpu_custom_call.1} parent=5 // pred_region
        %s562 = ssub.s32 %s12, 2
        // Predicated region
        $region53: #{tpu_custom_call.1} parent=51 // pred_check
          %p563 = pneg %p130
        $region54: #{tpu_custom_call.1} parent=51 // pred_check_branch
          %565 = sbr.rel (%p563) target = $region56
        $region55: #{tpu_custom_call.1} parent=51 // pred_region
          %p566 = scmp.lt.s32.totalorder %s18, 1
          %s567 = scalar_select %p566, %s18, 1
          %s568 = smul.addr %s567, 8
          %s569 = scalar_lea.vmem %s4, %s568
        $region56: #{tpu_custom_call.1} parent=51 // pred_fallthru
          _
      $region52: #{tpu_custom_call.1} parent=5 // pred_fallthru
        _
    $region6: #{tpu_custom_call.1} parent=1 // loop_footer
      %s16 = sadd.s32 1, %s12
    $region7: #{tpu_custom_call.1} parent=1 // loop_footer_branch
      %11 = sbr.rel target = $region3
    $region8: #{tpu_custom_call.1} parent=1 // loop_exit
      _
    %570 = vsyncpa [#allocation3], 1
    %s571 = scalar_lea.sflag [#allocation3], 1
    %572 = vsyncpa %s571, 1
    %573 = vsyncpa [#allocation5], 1

</llo_original>
